<compile_context>
chip_gen: v6e
topology: v6e:2x2x1
jax: 0.10.0
libtpu: 0.0.40
codegen_flags: <defaults>
</compile_context>

<pallas_src>
import functools

import jax
import jax.numpy as jnp
from jax import lax
from jax.experimental import pallas as pl
from jax.experimental.pallas import tpu as pltpu

BN_EPS = 1e-5  # PyTorch BatchNorm2d default


def _round_up(v, m):
    return -(-v // m) * m


def _vmem_limit_bytes():
    # Generation-gated VMEM cap: ~48 MiB on v7x (64 MiB physical per TC),
    # up to 96 MiB on v5e/v6e (128 MiB physical).  Our blocks are KiB-scale,
    # so any of these values is ample headroom.
    try:
        phys = pltpu.get_tpu_info().vmem_capacity_bytes
    except Exception:
        phys = 64 * 1024 * 1024
    return int(min(96 * 1024 * 1024, (phys * 3) // 4))


# ---------------------------------------------------------------------------
# Pass 1: fused conv (KH*KW shifted matmuls) + conv bias + packed BN partials.
# ---------------------------------------------------------------------------
def _conv_stats_kernel(x_ref, w_ref, b_ref, mask_ref, y_ref, stats_ref, *,
                       kh, kw, stride, oh, wq, cin):
    # x_ref:    (1, s*s*Cin, (Hq+1)*Wq) bf16  flat padded image (phase-split)
    # w_ref:    (KH*KW, OCp, Cin)       bf16
    # b_ref:    (OCp, 1)                f32
    # mask_ref: (1, OH*Wq)              f32   1.0 on real output columns
    # y_ref:    (1, OCp, OH*Wq)         bf16  conv + bias (garbage cols incl.)
    # stats_ref:(1, OCp, 2)             f32   packed [sum(acc), sum(acc^2)]
    mq = oh * wq
    ocp = w_ref.shape[1]
    acc = jnp.zeros((ocp, mq), jnp.float32)
    for i in range(kh):
        for j in range(kw):
            pi, qi = i % stride, i // stride
            pj, qj = j % stride, j // stride
            c0 = (pi * stride + pj) * cin
            start = qi * wq + qj
            # contiguous, unit-stride window of the flat image -> no reshape
            xwin = x_ref[0, c0:c0 + cin, start:start + mq]   # (Cin, OH*Wq)
            acc = acc + jnp.dot(w_ref[i * kw + j], xwin,
                                preferred_element_type=jnp.float32)

    # BN partial statistics from the f32 accumulator (pre-bias); the static
    # 0/1 mask drops the Wq-OW garbage columns -> stats are exact.
    accm = acc * mask_ref[...]
    s1 = jnp.sum(accm, axis=1, keepdims=True)            # (OCp, 1)
    s2 = jnp.sum(accm * acc, axis=1, keepdims=True)      # (OCp, 1) = sum(acc^2)
    lane = lax.broadcasted_iota(jnp.int32, (ocp, 2), 1)
    stats_ref[0] = jnp.where(lane == 0, s1, s2)          # single packed output

    # bf16 intermediate halves the y slab's HBM round-trip between the passes.
    y_ref[0] = (acc + b_ref[...]).astype(y_ref.dtype)


# ---------------------------------------------------------------------------
# Pass 2: y * scale + shift, ReLU.  Stores the final NCHW layout directly and
# drops the garbage columns on the way (no post-kernel transpose/slice copy).
# ---------------------------------------------------------------------------
def _bn_relu_kernel(y_ref, scale_ref, shift_ref, o_ref):
    # y_ref: (1, OCp, OH, Wq) bf16   scale/shift: (OCp, 1, 1) f32
    # o_ref: (1, OCp, OH, OW) f32
    ow = o_ref.shape[-1]
    y = y_ref[0, :, :, :ow].astype(jnp.float32)
    o_ref[0] = jnp.maximum(y * scale_ref[...] + shift_ref[...], 0.0)


def conv_forward(x, weight, bias, gamma, beta, stride, pad):
    """Conv2d(stride, pad) + BatchNorm2d (batch stats) + ReLU.

    x: (N, Cin, H, W) f32 NCHW; weight: (OC, Cin, KH, KW). Returns NCHW f32.
    """
    n, cin, h, w = x.shape
    oc, _, kh, kw = weight.shape
    s = int(stride)
    hp, wp = h + 2 * pad, w + 2 * pad
    oh = (hp - kh) // s + 1
    ow = (wp - kw) // s + 1

    # --- padded input, phase-split over the stride, flattened over (H, W) ----
    # bf16 MXU operands; one extra zero quotient-row keeps every shifted window
    # an in-bounds contiguous slice of the flat image.
    xb = x.astype(jnp.bfloat16)
    if s == 1:
        hq, wq = hp, wp
        xflat = jnp.pad(xb, ((0, 0), (0, 0), (pad, pad + 1), (pad, pad)))
        cc = cin
        xflat = xflat.reshape(n, cc, (hq + 1) * wq)
    else:
        hq, wq = -(-hp // s), -(-wp // s)
        xq = jnp.pad(xb, ((0, 0), (0, 0),
                          (pad, pad + hq * s - hp),
                          (pad, pad + wq * s - wp)))
        xq = xq.reshape(n, cin, hq, s, wq, s).transpose(0, 3, 5, 1, 2, 4)
        cc = s * s * cin
        xq = xq.reshape(n, cc, hq, wq)
        xq = jnp.pad(xq, ((0, 0), (0, 0), (0, 1), (0, 0)))
        xflat = xq.reshape(n, cc, (hq + 1) * wq)
    mq = oh * wq                         # per-image flattened output length

    # --- weights / per-channel params (pad OC to a sublane multiple) --------
    ocp = _round_up(oc, 8)
    wk = jnp.transpose(weight, (2, 3, 0, 1)).reshape(kh * kw, oc, cin)
    if ocp != oc:
        wk = jnp.pad(wk, ((0, 0), (0, ocp - oc), (0, 0)))
        bias = jnp.pad(bias, (0, ocp - oc))
        gamma = jnp.pad(gamma, (0, ocp - oc))
        beta = jnp.pad(beta, (0, ocp - oc))
    wk = wk.astype(jnp.bfloat16)
    bias_f32 = bias.astype(jnp.float32)
    bias_col = bias_f32.reshape(ocp, 1)

    # Static mask: 1.0 on real output columns, 0.0 on the Wq-OW garbage ones.
    mask = (jnp.arange(mq, dtype=jnp.int32) % wq < ow)
    mask = mask.astype(jnp.float32).reshape(1, mq)

    cparams = pltpu.CompilerParams(
        dimension_semantics=("parallel",),    # v7x: batch splits over both TCs
        vmem_limit_bytes=_vmem_limit_bytes())

    x_spec = pl.BlockSpec((1, cc, (hq + 1) * wq), lambda nn: (nn, 0, 0))
    if n >= 3:
        # v5e/v6e: deeper image-DMA pipelining once there are enough steps.
        x_spec = pl.BlockSpec((1, cc, (hq + 1) * wq), lambda nn: (nn, 0, 0),
                              pipeline_mode=pl.Buffered(3))

    # --- pass 1: fused conv + bias + packed per-image BN partial stats -------
    y_flat, stats = pl.pallas_call(
        functools.partial(_conv_stats_kernel, kh=kh, kw=kw, stride=s,
                          oh=oh, wq=wq, cin=cin),
        grid=(n,),
        out_shape=(
            jax.ShapeDtypeStruct((n, ocp, mq), jnp.bfloat16),
            jax.ShapeDtypeStruct((n, ocp, 2), jnp.float32),
        ),
        in_specs=[
            x_spec,
            pl.BlockSpec((kh * kw, ocp, cin), lambda nn: (0, 0, 0)),  # weights
            pl.BlockSpec((ocp, 1), lambda nn: (0, 0)),                # bias
            pl.BlockSpec((1, mq), lambda nn: (0, 0)),                 # mask
        ],
        out_specs=(
            pl.BlockSpec((1, ocp, mq), lambda nn: (nn, 0, 0)),
            pl.BlockSpec((1, ocp, 2), lambda nn: (nn, 0, 0)),
        ),
        compiler_params=cparams,
    )(xflat, wk, bias_col, mask)

    # --- tiny global reduce; fold BN (batch statistics) into scale/shift -----
    tot = jnp.sum(stats, axis=0)                         # (OCp, 2)
    inv_cnt = jnp.float32(1.0 / (n * oh * ow))
    mean_acc = tot[:, 0] * inv_cnt
    var = jnp.maximum(tot[:, 1] * inv_cnt - mean_acc * mean_acc, 0.0)
    mean_y = mean_acc + bias_f32                         # conv bias folded back
    scale = gamma.astype(jnp.float32) * lax.rsqrt(var + BN_EPS)
    shift = beta.astype(jnp.float32) - mean_y * scale

    # --- pass 2: normalize + ReLU, writing the final NCHW layout directly ----
    y4 = y_flat.reshape(n, ocp, oh, wq)                  # metadata-only reshape
    out = pl.pallas_call(
        _bn_relu_kernel,
        grid=(n,),
        out_shape=jax.ShapeDtypeStruct((n, ocp, oh, ow), jnp.float32),
        in_specs=[
            pl.BlockSpec((1, ocp, oh, wq), lambda nn: (nn, 0, 0, 0)),
            pl.BlockSpec((ocp, 1, 1), lambda nn: (0, 0, 0)),
            pl.BlockSpec((ocp, 1, 1), lambda nn: (0, 0, 0)),
        ],
        out_specs=pl.BlockSpec((1, ocp, oh, ow), lambda nn: (nn, 0, 0, 0)),
        compiler_params=cparams,
    )(y4, scale.reshape(ocp, 1, 1), shift.reshape(ocp, 1, 1))

    if ocp != oc:
        out = out[:, :oc]
    return out


def _reference(x, weight, bias, gamma, beta, stride, pad, *,
               conv_dtype=jnp.float32, y_round_dtype=None):
    y = lax.conv_general_dilated(
        x.astype(conv_dtype), weight.astype(conv_dtype),
        window_strides=(stride, stride),
        padding=[(pad, pad), (pad, pad)],
        dimension_numbers=("NCHW", "OIHW", "NCHW"),
        preferred_element_type=jnp.float32)
    y = y + bias.reshape(1, -1, 1, 1)
    mu = y.mean(axis=(0, 2, 3), keepdims=True)
    var = jnp.square(y - mu).mean(axis=(0, 2, 3), keepdims=True)
    if y_round_dtype is not None:                        # match bf16 y slab
        y = y.astype(y_round_dtype).astype(jnp.float32)
    y = (y - mu) * lax.rsqrt(var + BN_EPS)
    y = y * gamma.reshape(1, -1, 1, 1) + beta.reshape(1, -1, 1, 1)
    return jnp.maximum(y, 0.0)


if __name__ == "__main__":
    # Conv(inch=4, outch=8, kernel=3, s=1, pad=1)
    N, CIN, H, W = 2, 4, 16, 16
    OUTCH, KER, STRIDE, PAD = 8, 3, 1, 1

    key = jax.random.PRNGKey(0)
    kx, kw_, kb, kg, kbeta = jax.random.split(key, 5)
    x = jax.random.normal(kx, (N, CIN, H, W), jnp.float32)
    weight = jax.random.normal(kw_, (OUTCH, CIN, KER, KER), jnp.float32) * 0.1
    bias = jax.random.normal(kb, (OUTCH,), jnp.float32) * 0.1
    gamma = 1.0 + 0.1 * jax.random.normal(kg, (OUTCH,), jnp.float32)
    beta = 0.1 * jax.random.normal(kbeta, (OUTCH,), jnp.float32)

    out = conv_forward(x, weight, bias, gamma, beta, STRIDE, PAD)
    out = jax.block_until_ready(out)
    assert out.shape == (N, OUTCH, H, W), out.shape

    # Matched-precision reference (bf16 conv operands + bf16-rounded y slab):
    # verifies the kernel math tightly.
    ref_m = _reference(x, weight, bias, gamma, beta, STRIDE, PAD,
                       conv_dtype=jnp.bfloat16, y_round_dtype=jnp.bfloat16)
    assert jnp.allclose(out, ref_m, atol=2e-2, rtol=2e-2), \
        float(jnp.max(jnp.abs(out - ref_m)))

    # Pure-f32 reference: looser tolerance absorbs the bf16 MXU-operand and
    # bf16-y rounding (the intended precision contract of this kernel).
    ref_f32 = _reference(x, weight, bias, gamma, beta, STRIDE, PAD)
    assert jnp.allclose(out, ref_f32, atol=6e-2, rtol=6e-2), \
        float(jnp.max(jnp.abs(out - ref_f32)))

    print("KERNEL_OK")
</pallas_src>

<mosaic_0001>
module attributes {stable_mosaic.version = 11 : i64} {
  func.func @_conv_stats_kernel(%arg0: i32, %arg1: memref<1x4x342xbf16, #tpu.memory_space<vmem>>, %arg2: memref<9x8x4xbf16, #tpu.memory_space<vmem>>, %arg3: memref<8x1xf32, #tpu.memory_space<vmem>>, %arg4: memref<1x288xf32, #tpu.memory_space<vmem>>, %arg5: memref<1x8x288xbf16, #tpu.memory_space<vmem>>, %arg6: memref<1x8x2xf32, #tpu.memory_space<vmem>>) attributes {dimension_semantics = [#tpu.dimension_semantics<parallel>], iteration_bounds = array<i64: 2>, scalar_prefetch = 0 : i64, scratch_operands = 0 : i64, tpu.core_type = #tpu.core_type<tc>, window_params = [{transform_indices = @transform_0, window_bounds = array<i64: 1, 4, 342>}, {pipeline_mode = #tpu.pipeline_mode<synchronous>, transform_indices = @transform_1, window_bounds = array<i64: 9, 8, 4>}, {pipeline_mode = #tpu.pipeline_mode<synchronous>, transform_indices = @transform_2, window_bounds = array<i64: 8, 1>}, {pipeline_mode = #tpu.pipeline_mode<synchronous>, transform_indices = @transform_3, window_bounds = array<i64: 1, 288>}, {transform_indices = @transform_4, window_bounds = array<i64: 1, 8, 288>}, {transform_indices = @transform_5, window_bounds = array<i64: 1, 8, 2>}]} {
    %cst = arith.constant 0.000000e+00 : f32
    %0 = vector.broadcast %cst : f32 to vector<8x288xf32>
    %c0 = arith.constant 0 : index
    %c0_0 = arith.constant 0 : index
    %c0_1 = arith.constant 0 : index
    %1 = vector.load %arg1[%c0, %c0_0, %c0_1] : memref<1x4x342xbf16, #tpu.memory_space<vmem>>, vector<1x4x288xbf16>
    %2 = vector.shape_cast %1 : vector<1x4x288xbf16> to vector<4x288xbf16>
    %c0_2 = arith.constant 0 : index
    %c0_3 = arith.constant 0 : index
    %c0_4 = arith.constant 0 : index
    %3 = vector.load %arg2[%c0_2, %c0_3, %c0_4] : memref<9x8x4xbf16, #tpu.memory_space<vmem>>, vector<1x8x4xbf16>
    %4 = vector.shape_cast %3 : vector<1x8x4xbf16> to vector<8x4xbf16>
    %cst_5 = arith.constant dense<0.000000e+00> : vector<8x288xf32>
    %5 = tpu.matmul %4, %2, %cst_5 {dimension_numbers = #tpu.dot_dimension_numbers<[1], [0], [0], [1], [0, 0, 1, 1], [], []>} : vector<8x4xbf16>, vector<4x288xbf16>, vector<8x288xf32> -> vector<8x288xf32>
    %6 = arith.addf %0, %5 : vector<8x288xf32>
    %c0_6 = arith.constant 0 : index
    %c0_7 = arith.constant 0 : index
    %c1 = arith.constant 1 : index
    %7 = vector.load %arg1[%c0_6, %c0_7, %c1] : memref<1x4x342xbf16, #tpu.memory_space<vmem>>, vector<1x4x288xbf16>
    %8 = vector.shape_cast %7 : vector<1x4x288xbf16> to vector<4x288xbf16>
    %c1_8 = arith.constant 1 : index
    %c0_9 = arith.constant 0 : index
    %c0_10 = arith.constant 0 : index
    %9 = vector.load %arg2[%c1_8, %c0_9, %c0_10] : memref<9x8x4xbf16, #tpu.memory_space<vmem>>, vector<1x8x4xbf16>
    %10 = vector.shape_cast %9 : vector<1x8x4xbf16> to vector<8x4xbf16>
    %cst_11 = arith.constant dense<0.000000e+00> : vector<8x288xf32>
    %11 = tpu.matmul %10, %8, %cst_11 {dimension_numbers = #tpu.dot_dimension_numbers<[1], [0], [0], [1], [0, 0, 1, 1], [], []>} : vector<8x4xbf16>, vector<4x288xbf16>, vector<8x288xf32> -> vector<8x288xf32>
    %12 = arith.addf %6, %11 : vector<8x288xf32>
    %c0_12 = arith.constant 0 : index
    %c0_13 = arith.constant 0 : index
    %c2 = arith.constant 2 : index
    %13 = vector.load %arg1[%c0_12, %c0_13, %c2] : memref<1x4x342xbf16, #tpu.memory_space<vmem>>, vector<1x4x288xbf16>
    %14 = vector.shape_cast %13 : vector<1x4x288xbf16> to vector<4x288xbf16>
    %c2_14 = arith.constant 2 : index
    %c0_15 = arith.constant 0 : index
    %c0_16 = arith.constant 0 : index
    %15 = vector.load %arg2[%c2_14, %c0_15, %c0_16] : memref<9x8x4xbf16, #tpu.memory_space<vmem>>, vector<1x8x4xbf16>
    %16 = vector.shape_cast %15 : vector<1x8x4xbf16> to vector<8x4xbf16>
    %cst_17 = arith.constant dense<0.000000e+00> : vector<8x288xf32>
    %17 = tpu.matmul %16, %14, %cst_17 {dimension_numbers = #tpu.dot_dimension_numbers<[1], [0], [0], [1], [0, 0, 1, 1], [], []>} : vector<8x4xbf16>, vector<4x288xbf16>, vector<8x288xf32> -> vector<8x288xf32>
    %18 = arith.addf %12, %17 : vector<8x288xf32>
    %c0_18 = arith.constant 0 : index
    %c0_19 = arith.constant 0 : index
    %c18 = arith.constant 18 : index
    %19 = vector.load %arg1[%c0_18, %c0_19, %c18] : memref<1x4x342xbf16, #tpu.memory_space<vmem>>, vector<1x4x288xbf16>
    %20 = vector.shape_cast %19 : vector<1x4x288xbf16> to vector<4x288xbf16>
    %c3 = arith.constant 3 : index
    %c0_20 = arith.constant 0 : index
    %c0_21 = arith.constant 0 : index
    %21 = vector.load %arg2[%c3, %c0_20, %c0_21] : memref<9x8x4xbf16, #tpu.memory_space<vmem>>, vector<1x8x4xbf16>
    %22 = vector.shape_cast %21 : vector<1x8x4xbf16> to vector<8x4xbf16>
    %cst_22 = arith.constant dense<0.000000e+00> : vector<8x288xf32>
    %23 = tpu.matmul %22, %20, %cst_22 {dimension_numbers = #tpu.dot_dimension_numbers<[1], [0], [0], [1], [0, 0, 1, 1], [], []>} : vector<8x4xbf16>, vector<4x288xbf16>, vector<8x288xf32> -> vector<8x288xf32>
    %24 = arith.addf %18, %23 : vector<8x288xf32>
    %c0_23 = arith.constant 0 : index
    %c0_24 = arith.constant 0 : index
    %c19 = arith.constant 19 : index
    %25 = vector.load %arg1[%c0_23, %c0_24, %c19] : memref<1x4x342xbf16, #tpu.memory_space<vmem>>, vector<1x4x288xbf16>
    %26 = vector.shape_cast %25 : vector<1x4x288xbf16> to vector<4x288xbf16>
    %c4 = arith.constant 4 : index
    %c0_25 = arith.constant 0 : index
    %c0_26 = arith.constant 0 : index
    %27 = vector.load %arg2[%c4, %c0_25, %c0_26] : memref<9x8x4xbf16, #tpu.memory_space<vmem>>, vector<1x8x4xbf16>
    %28 = vector.shape_cast %27 : vector<1x8x4xbf16> to vector<8x4xbf16>
    %cst_27 = arith.constant dense<0.000000e+00> : vector<8x288xf32>
    %29 = tpu.matmul %28, %26, %cst_27 {dimension_numbers = #tpu.dot_dimension_numbers<[1], [0], [0], [1], [0, 0, 1, 1], [], []>} : vector<8x4xbf16>, vector<4x288xbf16>, vector<8x288xf32> -> vector<8x288xf32>
    %30 = arith.addf %24, %29 : vector<8x288xf32>
    %c0_28 = arith.constant 0 : index
    %c0_29 = arith.constant 0 : index
    %c20 = arith.constant 20 : index
    %31 = vector.load %arg1[%c0_28, %c0_29, %c20] : memref<1x4x342xbf16, #tpu.memory_space<vmem>>, vector<1x4x288xbf16>
    %32 = vector.shape_cast %31 : vector<1x4x288xbf16> to vector<4x288xbf16>
    %c5 = arith.constant 5 : index
    %c0_30 = arith.constant 0 : index
    %c0_31 = arith.constant 0 : index
    %33 = vector.load %arg2[%c5, %c0_30, %c0_31] : memref<9x8x4xbf16, #tpu.memory_space<vmem>>, vector<1x8x4xbf16>
    %34 = vector.shape_cast %33 : vector<1x8x4xbf16> to vector<8x4xbf16>
    %cst_32 = arith.constant dense<0.000000e+00> : vector<8x288xf32>
    %35 = tpu.matmul %34, %32, %cst_32 {dimension_numbers = #tpu.dot_dimension_numbers<[1], [0], [0], [1], [0, 0, 1, 1], [], []>} : vector<8x4xbf16>, vector<4x288xbf16>, vector<8x288xf32> -> vector<8x288xf32>
    %36 = arith.addf %30, %35 : vector<8x288xf32>
    %c0_33 = arith.constant 0 : index
    %c0_34 = arith.constant 0 : index
    %c36 = arith.constant 36 : index
    %37 = vector.load %arg1[%c0_33, %c0_34, %c36] : memref<1x4x342xbf16, #tpu.memory_space<vmem>>, vector<1x4x288xbf16>
    %38 = vector.shape_cast %37 : vector<1x4x288xbf16> to vector<4x288xbf16>
    %c6 = arith.constant 6 : index
    %c0_35 = arith.constant 0 : index
    %c0_36 = arith.constant 0 : index
    %39 = vector.load %arg2[%c6, %c0_35, %c0_36] : memref<9x8x4xbf16, #tpu.memory_space<vmem>>, vector<1x8x4xbf16>
    %40 = vector.shape_cast %39 : vector<1x8x4xbf16> to vector<8x4xbf16>
    %cst_37 = arith.constant dense<0.000000e+00> : vector<8x288xf32>
    %41 = tpu.matmul %40, %38, %cst_37 {dimension_numbers = #tpu.dot_dimension_numbers<[1], [0], [0], [1], [0, 0, 1, 1], [], []>} : vector<8x4xbf16>, vector<4x288xbf16>, vector<8x288xf32> -> vector<8x288xf32>
    %42 = arith.addf %36, %41 : vector<8x288xf32>
    %c0_38 = arith.constant 0 : index
    %c0_39 = arith.constant 0 : index
    %c37 = arith.constant 37 : index
    %43 = vector.load %arg1[%c0_38, %c0_39, %c37] : memref<1x4x342xbf16, #tpu.memory_space<vmem>>, vector<1x4x288xbf16>
    %44 = vector.shape_cast %43 : vector<1x4x288xbf16> to vector<4x288xbf16>
    %c7 = arith.constant 7 : index
    %c0_40 = arith.constant 0 : index
    %c0_41 = arith.constant 0 : index
    %45 = vector.load %arg2[%c7, %c0_40, %c0_41] : memref<9x8x4xbf16, #tpu.memory_space<vmem>>, vector<1x8x4xbf16>
    %46 = vector.shape_cast %45 : vector<1x8x4xbf16> to vector<8x4xbf16>
    %cst_42 = arith.constant dense<0.000000e+00> : vector<8x288xf32>
    %47 = tpu.matmul %46, %44, %cst_42 {dimension_numbers = #tpu.dot_dimension_numbers<[1], [0], [0], [1], [0, 0, 1, 1], [], []>} : vector<8x4xbf16>, vector<4x288xbf16>, vector<8x288xf32> -> vector<8x288xf32>
    %48 = arith.addf %42, %47 : vector<8x288xf32>
    %c0_43 = arith.constant 0 : index
    %c0_44 = arith.constant 0 : index
    %c38 = arith.constant 38 : index
    %49 = vector.load %arg1[%c0_43, %c0_44, %c38] : memref<1x4x342xbf16, #tpu.memory_space<vmem>>, vector<1x4x288xbf16>
    %50 = vector.shape_cast %49 : vector<1x4x288xbf16> to vector<4x288xbf16>
    %c8 = arith.constant 8 : index
    %c0_45 = arith.constant 0 : index
    %c0_46 = arith.constant 0 : index
    %51 = vector.load %arg2[%c8, %c0_45, %c0_46] : memref<9x8x4xbf16, #tpu.memory_space<vmem>>, vector<1x8x4xbf16>
    %52 = vector.shape_cast %51 : vector<1x8x4xbf16> to vector<8x4xbf16>
    %cst_47 = arith.constant dense<0.000000e+00> : vector<8x288xf32>
    %53 = tpu.matmul %52, %50, %cst_47 {dimension_numbers = #tpu.dot_dimension_numbers<[1], [0], [0], [1], [0, 0, 1, 1], [], []>} : vector<8x4xbf16>, vector<4x288xbf16>, vector<8x288xf32> -> vector<8x288xf32>
    %54 = arith.addf %48, %53 : vector<8x288xf32>
    %c0_48 = arith.constant 0 : index
    %c0_49 = arith.constant 0 : index
    %55 = vector.load %arg4[%c0_48, %c0_49] : memref<1x288xf32, #tpu.memory_space<vmem>>, vector<1x288xf32>
    %56 = vector.broadcast %55 : vector<1x288xf32> to vector<8x288xf32>
    %57 = arith.mulf %54, %56 : vector<8x288xf32>
    %cst_50 = arith.constant dense<0.000000e+00> : vector<8xf32>
    %58 = vector.multi_reduction <add>, %57, %cst_50 [1] : vector<8x288xf32> to vector<8xf32>
    %59 = vector.shape_cast %58 : vector<8xf32> to vector<8x1xf32>
    %60 = arith.mulf %57, %54 : vector<8x288xf32>
    %cst_51 = arith.constant dense<0.000000e+00> : vector<8xf32>
    %61 = vector.multi_reduction <add>, %60, %cst_51 [1] : vector<8x288xf32> to vector<8xf32>
    %62 = vector.shape_cast %61 : vector<8xf32> to vector<8x1xf32>
    %63 = tpu.iota {dimensions = array<i32: 1>} : vector<8x2xi32>
    %c0_i32 = arith.constant 0 : i32
    %64 = vector.broadcast %c0_i32 : i32 to vector<8x2xi32>
    %65 = arith.cmpi eq, %63, %64 : vector<8x2xi32>
    %66 = vector.shape_cast %59 : vector<8x1xf32> to vector<8x1xf32>
    %67 = vector.broadcast %66 : vector<8x1xf32> to vector<8x2xf32>
    %68 = vector.shape_cast %62 : vector<8x1xf32> to vector<8x1xf32>
    %69 = vector.broadcast %68 : vector<8x1xf32> to vector<8x2xf32>
    %70 = arith.select %65, %67, %69 : vector<8x2xi1>, vector<8x2xf32>
    %c0_52 = arith.constant 0 : index
    %c0_53 = arith.constant 0 : index
    %c0_54 = arith.constant 0 : index
    %71 = vector.load %arg6[%c0_52, %c0_53, %c0_54] : memref<1x8x2xf32, #tpu.memory_space<vmem>>, vector<1x8x2xf32>
    %72 = vector.shape_cast %71 : vector<1x8x2xf32> to vector<8x2xf32>
    %73 = vector.shape_cast %70 : vector<8x2xf32> to vector<1x8x2xf32>
    tpu.vector_store %arg6[%c0_52, %c0_53, %c0_54], %73 {strides = array<i32>} : memref<1x8x2xf32, #tpu.memory_space<vmem>>, vector<1x8x2xf32>,
    %c0_55 = arith.constant 0 : index
    %c0_56 = arith.constant 0 : index
    %74 = vector.load %arg3[%c0_55, %c0_56] : memref<8x1xf32, #tpu.memory_space<vmem>>, vector<8x1xf32>
    %75 = vector.broadcast %74 : vector<8x1xf32> to vector<8x288xf32>
    %76 = arith.addf %54, %75 : vector<8x288xf32>
    %77 = arith.truncf %76 : vector<8x288xf32> to vector<8x288xbf16>
    %c0_57 = arith.constant 0 : index
    %c0_58 = arith.constant 0 : index
    %c0_59 = arith.constant 0 : index
    %78 = vector.load %arg5[%c0_57, %c0_58, %c0_59] : memref<1x8x288xbf16, #tpu.memory_space<vmem>>, vector<1x8x288xbf16>
    %79 = vector.shape_cast %78 : vector<1x8x288xbf16> to vector<8x288xbf16>
    %80 = vector.shape_cast %77 : vector<8x288xbf16> to vector<1x8x288xbf16>
    tpu.vector_store %arg5[%c0_57, %c0_58, %c0_59], %80 {strides = array<i32>} : memref<1x8x288xbf16, #tpu.memory_space<vmem>>, vector<1x8x288xbf16>,
    return
  }
  func.func @transform_0(%arg0: i32) -> (i32, i32, i32) {
    %c0_i32 = arith.constant 0 : i32
    %c0_i32_0 = arith.constant 0 : i32
    %c0_i32_1 = arith.constant 0 : i32
    return %arg0, %c0_i32, %c0_i32_0 : i32, i32, i32
  }
  func.func @transform_1(%arg0: i32) -> (i32, i32, i32) {
    %c0_i32 = arith.constant 0 : i32
    %c0_i32_0 = arith.constant 0 : i32
    %c0_i32_1 = arith.constant 0 : i32
    %c0_i32_2 = arith.constant 0 : i32
    return %c0_i32, %c0_i32_0, %c0_i32_1 : i32, i32, i32
  }
  func.func @transform_2(%arg0: i32) -> (i32, i32) {
    %c0_i32 = arith.constant 0 : i32
    %c0_i32_0 = arith.constant 0 : i32
    %c0_i32_1 = arith.constant 0 : i32
    return %c0_i32, %c0_i32_0 : i32, i32
  }
  func.func @transform_3(%arg0: i32) -> (i32, i32) {
    %c0_i32 = arith.constant 0 : i32
    %c0_i32_0 = arith.constant 0 : i32
    %c0_i32_1 = arith.constant 0 : i32
    return %c0_i32, %c0_i32_0 : i32, i32
  }
  func.func @transform_4(%arg0: i32) -> (i32, i32, i32) {
    %c0_i32 = arith.constant 0 : i32
    %c0_i32_0 = arith.constant 0 : i32
    %c0_i32_1 = arith.constant 0 : i32
    return %arg0, %c0_i32, %c0_i32_0 : i32, i32, i32
  }
  func.func @transform_5(%arg0: i32) -> (i32, i32, i32) {
    %c0_i32 = arith.constant 0 : i32
    %c0_i32_0 = arith.constant 0 : i32
    %c0_i32_1 = arith.constant 0 : i32
    return %arg0, %c0_i32, %c0_i32_0 : i32, i32, i32
  }
}

</mosaic_0001>

<llo_original>
// kernel: tpu_custom_call.1
$region0: #{tpu_custom_call.1}
  #allocation0 [shape = 'u32[]', space=smem, size = 0x4, offset = 0x4, fixed_abs, tag = 'smem constant byte address 0x4 - core index']
  #allocation1 [shape = 'u32[144,128]{1,0:T(1,128)}', space=vmem, size = 0x12000, scoped, tag = 'internal scratch']
  %s0 = inlined_call_operand.vmem [shape: bf16[2,4,342], index: 0, kind: input, shape index: {}]
  %s1 = inlined_call_operand.vmem [shape: bf16[9,8,4], index: 1, kind: input, shape index: {}]
  %s2 = inlined_call_operand.vmem [shape: f32[8,1], index: 2, kind: input, shape index: {}]
  %s3 = inlined_call_operand.vmem [shape: f32[1,288], index: 3, kind: input, shape index: {}]
  %s4 = inlined_call_operand.hbm [shape: bf16[2,8,288], index: 4, kind: output, shape index: {0}]
  %s5 = inlined_call_operand.vmem [shape: f32[2,8,2], index: 5, kind: output, shape index: {1}]
  %6 = xla_tuple %s4, %s5
  %s7 = sld [smem:[#allocation0]]
  $region57: #{tpu_custom_call.1} parent=0
    _
  %s9 = ssub.s32 1, %s7
  %s10 = scalar_select 0, %s9, %s7
  $region1: #{tpu_custom_call.1} parent=0
    #allocation2 [shape = 'u8[12288]{0}', space=vmem, size = 0x3000, scoped, tag = 'output window, operand 0']
    #allocation3 [shape = 's32[2]{0}', space=sflag, size = 0x8, scoped, tag = 'scoped memory for tpu_custom_call.1']
    %11 = vsyncpa [#allocation3], 0
    %s12 = scalar_lea.sflag [#allocation3], 1
    %13 = vsyncpa %s12, 0
    loop: start=0, step=1, limit=4
    $region2: #{tpu_custom_call.1} parent=1 // loop_pre_header
      _
    $region3: #{tpu_custom_call.1} parent=1 // loop_header
      %s15 = sphi 0, %s19
      %p16 = scmp.ge.s32.totalorder %s15, 4
      %s25 = sphi 0, %s27
      %s28 = sphi 0, %s25
      %s29 = sphi 0, %s28
      %s45 = sphi 0, %s29
      %s49 = sphi 0, %s49
      %s51 = sphi 0, %s49
      %s52 = sphi 0, %s51
      %s66 = sphi 0, %s52
      %s70 = sphi 0, %s70
      %s72 = sphi 0, %s70
      %s73 = sphi 0, %s72
      %s87 = sphi 0, %s73
      %s91 = sphi 0, %s91
      %s93 = sphi 0, %s91
      %s94 = sphi 0, %s93
      %s108 = sphi 0, %s94
      %s114 = sphi 0, %s116
      %s117 = sphi 0, %s114
      %s118 = sphi 0, %s117
      %s134 = sphi 0, %s118
      %s140 = sphi 0, %s142
      %s143 = sphi 0, %s140
      %s144 = sphi 0, %s143
      %s160 = sphi 0, %s144
    $region4: #{tpu_custom_call.1} parent=1 // loop_header_branch
      %18 = sbr.rel (%p16) target = $region8
    $region5: #{tpu_custom_call.1} parent=1 // loop_body
      %s20 = ssub.s32 %s15, 1
      %s21 = ssub.s32 %s15, 2
      %s22 = sadd.s32 %s15, 1
      %s23 = ssub.s32 %s15, %s22
      %p24 = scmp.eq.s32.totalorder %s23, 0
      %s26 = sadd.s32 %s25, 1
      %s27 = scalar_select %p24, %s25, %s26
      %p30 = pneg %p24
      %p31 = scmp.eq.s32.totalorder %s15, 1
      %p32 = por %p30, %p31
      %p33 = scmp.ne.s32.totalorder %s25, %s28
      %p34 = scmp.eq.s32.totalorder %s15, 0
      %p35 = por %p33, %p34
      %p36 = scmp.ne.s32.totalorder %s25, %s28
      %p37 = scmp.eq.s32.totalorder %s20, 1
      %p38 = por %p36, %p37
      %p39 = scmp.ne.s32.totalorder %s28, %s29
      %p40 = scmp.eq.s32.totalorder %s20, 0
      %p41 = por %p39, %p40
      %p42 = scmp.ne.s32.totalorder %s28, %s29
      %p43 = scmp.eq.s32.totalorder %s21, 1
      %p44 = por %p42, %p43
      %p46 = scmp.ne.s32.totalorder %s29, %s45
      %p47 = scmp.eq.s32.totalorder %s21, 0
      %p48 = por %p46, %p47
      %s50 = sadd.s32 %s49, 1
      %p53 = scmp.eq.s32.totalorder %s15, 1
      %p54 = scmp.ne.s32.totalorder %s49, %s51
      %p55 = scmp.eq.s32.totalorder %s15, 0
      %p56 = por %p54, %p55
      %p57 = scmp.ne.s32.totalorder %s49, %s51
      %p58 = scmp.eq.s32.totalorder %s20, 1
      %p59 = por %p57, %p58
      %p60 = scmp.ne.s32.totalorder %s51, %s52
      %p61 = scmp.eq.s32.totalorder %s20, 0
      %p62 = por %p60, %p61
      %p63 = scmp.ne.s32.totalorder %s51, %s52
      %p64 = scmp.eq.s32.totalorder %s21, 1
      %p65 = por %p63, %p64
      %p67 = scmp.ne.s32.totalorder %s52, %s66
      %p68 = scmp.eq.s32.totalorder %s21, 0
      %p69 = por %p67, %p68
      %s71 = sadd.s32 %s70, 1
      %p74 = scmp.eq.s32.totalorder %s15, 1
      %p75 = scmp.ne.s32.totalorder %s70, %s72
      %p76 = scmp.eq.s32.totalorder %s15, 0
      %p77 = por %p75, %p76
      %p78 = scmp.ne.s32.totalorder %s70, %s72
      %p79 = scmp.eq.s32.totalorder %s20, 1
      %p80 = por %p78, %p79
      %p81 = scmp.ne.s32.totalorder %s72, %s73
      %p82 = scmp.eq.s32.totalorder %s20, 0
      %p83 = por %p81, %p82
      %p84 = scmp.ne.s32.totalorder %s72, %s73
      %p85 = scmp.eq.s32.totalorder %s21, 1
      %p86 = por %p84, %p85
      %p88 = scmp.ne.s32.totalorder %s73, %s87
      %p89 = scmp.eq.s32.totalorder %s21, 0
      %p90 = por %p88, %p89
      %s92 = sadd.s32 %s91, 1
      %p95 = scmp.eq.s32.totalorder %s15, 1
      %p96 = scmp.ne.s32.totalorder %s91, %s93
      %p97 = scmp.eq.s32.totalorder %s15, 0
      %p98 = por %p96, %p97
      %p99 = scmp.ne.s32.totalorder %s91, %s93
      %p100 = scmp.eq.s32.totalorder %s20, 1
      %p101 = por %p99, %p100
      %p102 = scmp.ne.s32.totalorder %s93, %s94
      %p103 = scmp.eq.s32.totalorder %s20, 0
      %p104 = por %p102, %p103
      %p105 = scmp.ne.s32.totalorder %s93, %s94
      %p106 = scmp.eq.s32.totalorder %s21, 1
      %p107 = por %p105, %p106
      %p109 = scmp.ne.s32.totalorder %s94, %s108
      %p110 = scmp.eq.s32.totalorder %s21, 0
      %p111 = por %p109, %p110
      %s112 = ssub.s32 %s15, %s22
      %p113 = scmp.eq.s32.totalorder %s112, 0
      %s115 = sadd.s32 %s114, 1
      %s116 = scalar_select %p113, %s114, %s115
      %p119 = pneg %p113
      %p120 = scmp.eq.s32.totalorder %s15, 1
      %p121 = por %p119, %p120
      %p122 = scmp.ne.s32.totalorder %s114, %s117
      %p123 = scmp.eq.s32.totalorder %s15, 0
      %p124 = por %p122, %p123
      %p125 = scmp.ne.s32.totalorder %s114, %s117
      %p126 = scmp.eq.s32.totalorder %s20, 1
      %p127 = por %p125, %p126
      %p128 = scmp.ne.s32.totalorder %s117, %s118
      %p129 = scmp.eq.s32.totalorder %s20, 0
      %p130 = por %p128, %p129
      %p131 = scmp.ne.s32.totalorder %s117, %s118
      %p132 = scmp.eq.s32.totalorder %s21, 1
      %p133 = por %p131, %p132
      %p135 = scmp.ne.s32.totalorder %s118, %s134
      %p136 = scmp.eq.s32.totalorder %s21, 0
      %p137 = por %p135, %p136
      %s138 = ssub.s32 %s15, %s22
      %p139 = scmp.eq.s32.totalorder %s138, 0
      %s141 = sadd.s32 %s140, 1
      %s142 = scalar_select %p139, %s140, %s141
      %p145 = pneg %p139
      %p146 = scmp.eq.s32.totalorder %s15, 1
      %p147 = por %p145, %p146
      %p148 = scmp.ne.s32.totalorder %s140, %s143
      %p149 = scmp.eq.s32.totalorder %s15, 0
      %p150 = por %p148, %p149
      %p151 = scmp.ne.s32.totalorder %s140, %s143
      %p152 = scmp.eq.s32.totalorder %s20, 1
      %p153 = por %p151, %p152
      %p154 = scmp.ne.s32.totalorder %s143, %s144
      %p155 = scmp.eq.s32.totalorder %s20, 0
      %p156 = por %p154, %p155
      %p157 = scmp.ne.s32.totalorder %s143, %s144
      %p158 = scmp.eq.s32.totalorder %s21, 1
      %p159 = por %p157, %p158
      %p161 = scmp.ne.s32.totalorder %s144, %s160
      %p162 = scmp.eq.s32.totalorder %s21, 0
      %p163 = por %p161, %p162
      %p164 = scmp.le.s32.totalorder 1, %s15
      %p165 = scmp.lt.s32.totalorder %s15, 3
      %p166 = pnand %p164, %p165
      %p167 = pneg %p166
      // Predicated region
      $region9: #{tpu_custom_call.1} parent=5 // pred_check
        _
      $region10: #{tpu_custom_call.1} parent=5 // pred_check_branch
        %169 = sbr.rel (%p166) target = $region12
      $region11: #{tpu_custom_call.1} parent=5 // pred_region
        %s170 = ssub.s32 %s15, 1
        // Predicated region
        $region13: #{tpu_custom_call.1} parent=11 // pred_check
          %p171 = pneg %p62
        $region14: #{tpu_custom_call.1} parent=11 // pred_check_branch
          %173 = sbr.rel (%p171) target = $region16
        $region15: #{tpu_custom_call.1} parent=11 // pred_region
          _
        $region16: #{tpu_custom_call.1} parent=11 // pred_fallthru
          _
        // Predicated region
        $region17: #{tpu_custom_call.1} parent=11 // pred_check
          %p174 = pneg %p83
        $region18: #{tpu_custom_call.1} parent=11 // pred_check_branch
          %176 = sbr.rel (%p174) target = $region20
        $region19: #{tpu_custom_call.1} parent=11 // pred_region
          _
        $region20: #{tpu_custom_call.1} parent=11 // pred_fallthru
          _
        // Predicated region
        $region21: #{tpu_custom_call.1} parent=11 // pred_check
          %p177 = pneg %p104
        $region22: #{tpu_custom_call.1} parent=11 // pred_check_branch
          %179 = sbr.rel (%p177) target = $region24
        $region23: #{tpu_custom_call.1} parent=11 // pred_region
          _
        $region24: #{tpu_custom_call.1} parent=11 // pred_fallthru
          _
      $region12: #{tpu_custom_call.1} parent=5 // pred_fallthru
        _
      %p180 = scmp.lt.s32.totalorder %s15, 2
      // Predicated region
      $region25: #{tpu_custom_call.1} parent=5 // pred_check
        %p181 = pneg %p180
      $region26: #{tpu_custom_call.1} parent=5 // pred_check_branch
        %183 = sbr.rel (%p181) target = $region28
      $region27: #{tpu_custom_call.1} parent=5 // pred_region
        // Predicated region
        $region29: #{tpu_custom_call.1} parent=27 // pred_check
          %p184 = pneg %p35
        $region30: #{tpu_custom_call.1} parent=27 // pred_check_branch
          %186 = sbr.rel (%p184) target = $region32
        $region31: #{tpu_custom_call.1} parent=27 // pred_region
          %p187 = scmp.lt.s32.totalorder %s15, 1
          %s188 = scalar_select %p187, %s15, 1
          %s189 = smul.addr %s188, 3
          %s190 = smul.addr %s189, 2
          %s191 = scalar_lea.vmem %s0, %s190
        $region32: #{tpu_custom_call.1} parent=27 // pred_fallthru
          _
      $region28: #{tpu_custom_call.1} parent=5 // pred_fallthru
        _
      %p192 = scmp.le.s32.totalorder 1, %s15
      %p193 = scmp.lt.s32.totalorder %s15, 3
      %p194 = pnand %p192, %p193
      %p195 = pneg %p194
      // Predicated region
      $region33: #{tpu_custom_call.1} parent=5 // pred_check
        _
      $region34: #{tpu_custom_call.1} parent=5 // pred_check_branch
        %197 = sbr.rel (%p194) target = $region36
      $region35: #{tpu_custom_call.1} parent=5 // pred_region
        %s198 = ssub.s32 %s15, 1
        %p199 = scmp.lt.s32.totalorder %s20, 1
        %s200 = scalar_select %p199, %s20, 1
        %s201 = smul.addr %s200, 3
        %s202 = smul.addr %s201, 2
        %s203 = scalar_lea.vmem %s0, %s202
        %p204 = pneg %p41
        %p205 = pneg %p38
        %p206 = pneg %p62
        %p207 = pneg %p59
        %p208 = pneg %p83
        %p209 = pneg %p80
        %p210 = pneg %p104
        %p211 = pneg %p101
        %p212 = pneg %p130
        %p213 = pneg %p127
        %s214 = sand.u32 %s117, 1
        %s215 = scalar_lea.sflag [#allocation3], %s214
        %s216 = sand.u32 %s117, 1
        %s217 = smul.addr %s216, 12
        %s218 = scalar_lea.vmem [#allocation2], %s217
        %p219 = pneg %p156
        %p220 = pneg %p153
        %p221 = scmp.lt.s32.totalorder %s20, 1
        %s222 = scalar_select %p221, %s20, 1
        %s223 = smul.addr %s222, 8
        %s224 = scalar_lea.vmem %s5, %s223
        %p225 = scmp.lt.s32.totalorder %s20, 1
        %s226 = scalar_select %p225, %s20, 1
        %s227 = smul.addr %s226, 3
        %s228 = smul.addr %s227, 2
        %s229 = scalar_lea.vmem %s0, %s228
        %p230 = scmp.lt.s32.totalorder %s20, 1
        %s231 = scalar_select %p230, %s20, 1
        %s232 = smul.addr %s231, 8
        %s233 = scalar_lea.vmem %s5, %s232
        %v235 = vld [vmem:[%s229] sm:$0x3f]
        %v236 = vld [vmem:[%s1] sm:$0xf]
        %s237 = scalar_lea.vmem %s1, 4
        %v238 = vld [vmem:[%s237] sm:$0xf]
        %v240 = vcombine.high %v235, %v235
        %v242 = vunpack.c.l.s4 1983009808
        %v243 = vunpack.c.0.s8 %v242
        %v244 = vlaneseq
        %v245 = vshrl.u32 %v244, 7
        %v246 = vsub.s32 %v243, %v245
        %v247 = vrot.slane %v235, %v246
        %v249 = vunpack.c.l.s4 1983009808
        %v250 = vunpack.c.0.s8 %v249
        %v251 = vlaneseq
        %v252 = vshrl.u32 %v251, 7
        %v253 = vsub.s32 %v250, %v252
        %v254 = vrot.slane %v240, %v253
        %v255 = vcombine.high %v247, %v247
        %256 = vrot.lane.b32.xlu0 %v247, 127
        %v257 = vpop.permute.xlu0 %256
        %258 = vrot.lane.b32.xlu0 %v255, 127
        %v259 = vpop.permute.xlu0 %258
        %260 = vrot.lane.b32.xlu0 %v254, 127
        %v261 = vpop.permute.xlu0 %260
        %vm262 = vcmask 1039360
        %v263 = vsel %vm262, %v257, %v259
        %v264 = vsel %vm262, %v259, %v261
        %vm265 = vcmask 31744
        %v267 = vsel %vm265, %v238, 0
        %vm269 = vcmask 1041408
        %v271 = vsel %vm269, %v263, 0
        %v274 = vsel %vm269, %v264, 0
        %v277 = vsel %vm269, %v261, 0
        %279 = vmatprep.subr.bf16.mxu0 0
        %280 = vmatpush1.bf16.msra.mxu0 0
        %281 = vmatprep.subr.bf16.mxu0 0
        %282 = vmatpush1.bf16.msra.mxu0 0
        %283 = vmatprep.subr.bf16.mxu0 0
        %284 = vmatpush1.bf16.msra.mxu0 0
        %285 = vmatprep.subr.bf16.mxu0 0
        %286 = vmatpush1.bf16.msra.mxu0 0
        %287 = vmatprep.subr.bf16.mxu0 0
        %288 = vmatpush1.bf16.msra.mxu0 0
        %289 = vmatprep.subr.bf16.mxu0 0
        %290 = vmatpush1.bf16.msra.mxu0 0
        %291 = vmatprep.subr.bf16.mxu0 0
        %292 = vmatpush1.bf16.msra.mxu0 0
        %293 = vmatprep.subr.bf16.mxu0 %v274
        %294 = vmatpush1.bf16.msra.mxu0 %v271
        %295 = vmatprep.subr.bf16.mxu0 0
        %296 = vmatpush2.bf16.msra.mxu0 0
        %297 = vmatprep.subr.bf16.mxu0 0
        %298 = vmatpush2.bf16.msra.mxu0 0
        %299 = vmatprep.subr.bf16.mxu0 0
        %300 = vmatpush2.bf16.msra.mxu0 0
        %301 = vmatprep.subr.bf16.mxu0 0
        %302 = vmatpush2.bf16.msra.mxu0 0
        %303 = vmatprep.subr.bf16.mxu0 0
        %304 = vmatpush2.bf16.msra.mxu0 0
        %305 = vmatprep.subr.bf16.mxu0 0
        %306 = vmatpush2.bf16.msra.mxu0 0
        %307 = vmatprep.subr.bf16.mxu0 0
        %308 = vmatpush2.bf16.msra.mxu0 0
        %309 = vmatprep.subr.bf16.mxu0 0
        %310 = vmatpush2.bf16.msra.mxu0 0
        %311 = vmatprep.mubr.bf16.mxu0 0
        %312 = vmatmul.mubr.bf16.gmra.mxu0 %v267
        %v313 = vpop.f32.mrf.mxu0
        %v314 = vadd.f32 0.0, %v313
        %v315 = vpop.f32.mrf.mxu0
        %v316 = vadd.f32 0.0, %v315
        %v317 = vpop.f32.mrf.mxu0
        %v318 = vpop.f32.mrf.mxu0
        %319 = vdwg.mxu0
        %320 = vmatprep.subr.bf16.mxu0 0
        %321 = vmatpush1.bf16.msra.mxu0 0
        %322 = vmatprep.subr.bf16.mxu0 0
        %323 = vmatpush1.bf16.msra.mxu0 0
        %324 = vmatprep.subr.bf16.mxu0 0
        %325 = vmatpush1.bf16.msra.mxu0 0
        %326 = vmatprep.subr.bf16.mxu0 0
        %327 = vmatpush1.bf16.msra.mxu0 0
        %328 = vmatprep.subr.bf16.mxu0 0
        %329 = vmatpush1.bf16.msra.mxu0 0
        %330 = vmatprep.subr.bf16.mxu0 0
        %331 = vmatpush1.bf16.msra.mxu0 0
        %332 = vmatprep.subr.bf16.mxu0 0
        %333 = vmatpush1.bf16.msra.mxu0 0
        %334 = vmatprep.subr.bf16.mxu0 0
        %335 = vmatpush1.bf16.msra.mxu0 %v277
        %336 = vmatprep.subr.bf16.mxu0 0
        %337 = vmatpush2.bf16.msra.mxu0 0
        %338 = vmatprep.subr.bf16.mxu0 0
        %339 = vmatpush2.bf16.msra.mxu0 0
        %340 = vmatprep.subr.bf16.mxu0 0
        %341 = vmatpush2.bf16.msra.mxu0 0
        %342 = vmatprep.subr.bf16.mxu0 0
        %343 = vmatpush2.bf16.msra.mxu0 0
        %344 = vmatprep.subr.bf16.mxu0 0
        %345 = vmatpush2.bf16.msra.mxu0 0
        %346 = vmatprep.subr.bf16.mxu0 0
        %347 = vmatpush2.bf16.msra.mxu0 0
        %348 = vmatprep.subr.bf16.mxu0 0
        %349 = vmatpush2.bf16.msra.mxu0 0
        %350 = vmatprep.subr.bf16.mxu0 0
        %351 = vmatpush2.bf16.msra.mxu0 0
        %352 = vmatprep.mubr.bf16.mxu0 0
        %353 = vmatmul.mubr.bf16.gmra.mxu0 %v267
        %v354 = vpop.f32.mrf.mxu0
        %v355 = vadd.f32 0.0, %v354
        %v356 = vpop.f32.mrf.mxu0
        %v357 = vpop.f32.mrf.mxu0
        %v358 = vpop.f32.mrf.mxu0
        %359 = vdwg.mxu0
        %v361 = vsel %vm265, %v236, 0
        %v364 = vsel %vm269, %v247, 0
        %v367 = vsel %vm269, %v255, 0
        %v370 = vsel %vm269, %v254, 0
        %372 = vmatprep.subr.bf16.mxu0 0
        %373 = vmatpush1.bf16.msra.mxu0 0
        %374 = vmatprep.subr.bf16.mxu0 0
        %375 = vmatpush1.bf16.msra.mxu0 0
        %376 = vmatprep.subr.bf16.mxu0 0
        %377 = vmatpush1.bf16.msra.mxu0 0
        %378 = vmatprep.subr.bf16.mxu0 0
        %379 = vmatpush1.bf16.msra.mxu0 0
        %380 = vmatprep.subr.bf16.mxu0 0
        %381 = vmatpush1.bf16.msra.mxu0 0
        %382 = vmatprep.subr.bf16.mxu0 0
        %383 = vmatpush1.bf16.msra.mxu0 0
        %384 = vmatprep.subr.bf16.mxu0 0
        %385 = vmatpush1.bf16.msra.mxu0 0
        %386 = vmatprep.subr.bf16.mxu0 %v367
        %387 = vmatpush1.bf16.msra.mxu0 %v364
        %388 = vmatprep.subr.bf16.mxu0 0
        %389 = vmatpush2.bf16.msra.mxu0 0
        %390 = vmatprep.subr.bf16.mxu0 0
        %391 = vmatpush2.bf16.msra.mxu0 0
        %392 = vmatprep.subr.bf16.mxu0 0
        %393 = vmatpush2.bf16.msra.mxu0 0
        %394 = vmatprep.subr.bf16.mxu0 0
        %395 = vmatpush2.bf16.msra.mxu0 0
        %396 = vmatprep.subr.bf16.mxu0 0
        %397 = vmatpush2.bf16.msra.mxu0 0
        %398 = vmatprep.subr.bf16.mxu0 0
        %399 = vmatpush2.bf16.msra.mxu0 0
        %400 = vmatprep.subr.bf16.mxu0 0
        %401 = vmatpush2.bf16.msra.mxu0 0
        %402 = vmatprep.subr.bf16.mxu0 0
        %403 = vmatpush2.bf16.msra.mxu0 0
        %404 = vmatprep.mubr.bf16.mxu0 0
        %405 = vmatmul.mubr.bf16.gmra.mxu0 %v361
        %v406 = vpop.f32.mrf.mxu0
        %v407 = vadd.f32 %v314, %v406
        %v408 = vpop.f32.mrf.mxu0
        %v409 = vadd.f32 %v316, %v408
        %v410 = vpop.f32.mrf.mxu0
        %v411 = vpop.f32.mrf.mxu0
        %412 = vdwg.mxu0
        %413 = vmatprep.subr.bf16.mxu0 0
        %414 = vmatpush1.bf16.msra.mxu0 0
        %415 = vmatprep.subr.bf16.mxu0 0
        %416 = vmatpush1.bf16.msra.mxu0 0
        %417 = vmatprep.subr.bf16.mxu0 0
        %418 = vmatpush1.bf16.msra.mxu0 0
        %419 = vmatprep.subr.bf16.mxu0 0
        %420 = vmatpush1.bf16.msra.mxu0 0
        %421 = vmatprep.subr.bf16.mxu0 0
        %422 = vmatpush1.bf16.msra.mxu0 0
        %423 = vmatprep.subr.bf16.mxu0 0
        %424 = vmatpush1.bf16.msra.mxu0 0
        %425 = vmatprep.subr.bf16.mxu0 0
        %426 = vmatpush1.bf16.msra.mxu0 0
        %427 = vmatprep.subr.bf16.mxu0 0
        %428 = vmatpush1.bf16.msra.mxu0 %v370
        %429 = vmatprep.subr.bf16.mxu0 0
        %430 = vmatpush2.bf16.msra.mxu0 0
        %431 = vmatprep.subr.bf16.mxu0 0
        %432 = vmatpush2.bf16.msra.mxu0 0
        %433 = vmatprep.subr.bf16.mxu0 0
        %434 = vmatpush2.bf16.msra.mxu0 0
        %435 = vmatprep.subr.bf16.mxu0 0
        %436 = vmatpush2.bf16.msra.mxu0 0
        %437 = vmatprep.subr.bf16.mxu0 0
        %438 = vmatpush2.bf16.msra.mxu0 0
        %439 = vmatprep.subr.bf16.mxu0 0
        %440 = vmatpush2.bf16.msra.mxu0 0
        %441 = vmatprep.subr.bf16.mxu0 0
        %442 = vmatpush2.bf16.msra.mxu0 0
        %443 = vmatprep.subr.bf16.mxu0 0
        %444 = vmatpush2.bf16.msra.mxu0 0
        %445 = vmatprep.mubr.bf16.mxu0 0
        %446 = vmatmul.mubr.bf16.gmra.mxu0 %v361
        %v447 = vpop.f32.mrf.mxu0
        %v448 = vadd.f32 %v355, %v447
        %v449 = vpop.f32.mrf.mxu0
        %v450 = vpop.f32.mrf.mxu0
        %v451 = vpop.f32.mrf.mxu0
        %452 = vdwg.mxu0
        %v453 = vld [vmem:[%s229] sm:$0x3f]
        %s454 = scalar_lea.vmem %s1, 8
        %v455 = vld [vmem:[%s454] sm:$0xf]
        %v457 = vcombine.high %v453, %v453
        %v459 = vunpack.c.l.s4 1983009808
        %v460 = vunpack.c.0.s8 %v459
        %v461 = vlaneseq
        %v462 = vshrl.u32 %v461, 7
        %v463 = vsub.s32 %v460, %v462
        %v464 = vrot.slane %v453, %v463
        %v466 = vunpack.c.l.s4 1983009808
        %v467 = vunpack.c.0.s8 %v466
        %v468 = vlaneseq
        %v469 = vshrl.u32 %v468, 7
        %v470 = vsub.s32 %v467, %v469
        %v471 = vrot.slane %v457, %v470
        %v472 = vcombine.high %v464, %v464
        %473 = vrot.lane.b32.xlu0 %v464, 126
        %v474 = vpop.permute.xlu0 %473
        %475 = vrot.lane.b32.xlu0 %v472, 126
        %v476 = vpop.permute.xlu0 %475
        %477 = vrot.lane.b32.xlu0 %v471, 126
        %v478 = vpop.permute.xlu0 %477
        %vm479 = vcmask 1031168
        %v480 = vsel %vm479, %v474, %v476
        %v481 = vsel %vm479, %v476, %v478
        %v483 = vsel %vm265, %v455, 0
        %v486 = vsel %vm269, %v480, 0
        %v489 = vsel %vm269, %v481, 0
        %v492 = vsel %vm269, %v478, 0
        %494 = vmatprep.subr.bf16.mxu0 0
        %495 = vmatpush1.bf16.msra.mxu0 0
        %496 = vmatprep.subr.bf16.mxu0 0
        %497 = vmatpush1.bf16.msra.mxu0 0
        %498 = vmatprep.subr.bf16.mxu0 0
        %499 = vmatpush1.bf16.msra.mxu0 0
        %500 = vmatprep.subr.bf16.mxu0 0
        %501 = vmatpush1.bf16.msra.mxu0 0
        %502 = vmatprep.subr.bf16.mxu0 0
        %503 = vmatpush1.bf16.msra.mxu0 0
        %504 = vmatprep.subr.bf16.mxu0 0
        %505 = vmatpush1.bf16.msra.mxu0 0
        %506 = vmatprep.subr.bf16.mxu0 0
        %507 = vmatpush1.bf16.msra.mxu0 0
        %508 = vmatprep.subr.bf16.mxu0 %v489
        %509 = vmatpush1.bf16.msra.mxu0 %v486
        %510 = vmatprep.subr.bf16.mxu0 0
        %511 = vmatpush2.bf16.msra.mxu0 0
        %512 = vmatprep.subr.bf16.mxu0 0
        %513 = vmatpush2.bf16.msra.mxu0 0
        %514 = vmatprep.subr.bf16.mxu0 0
        %515 = vmatpush2.bf16.msra.mxu0 0
        %516 = vmatprep.subr.bf16.mxu0 0
        %517 = vmatpush2.bf16.msra.mxu0 0
        %518 = vmatprep.subr.bf16.mxu0 0
        %519 = vmatpush2.bf16.msra.mxu0 0
        %520 = vmatprep.subr.bf16.mxu0 0
        %521 = vmatpush2.bf16.msra.mxu0 0
        %522 = vmatprep.subr.bf16.mxu0 0
        %523 = vmatpush2.bf16.msra.mxu0 0
        %524 = vmatprep.subr.bf16.mxu0 0
        %525 = vmatpush2.bf16.msra.mxu0 0
        %526 = vmatprep.mubr.bf16.mxu0 0
        %527 = vmatmul.mubr.bf16.gmra.mxu0 %v483
        %v528 = vpop.f32.mrf.mxu0
        %v529 = vadd.f32 0.0, %v528
        %v530 = vpop.f32.mrf.mxu0
        %v531 = vadd.f32 0.0, %v530
        %v532 = vpop.f32.mrf.mxu0
        %v533 = vpop.f32.mrf.mxu0
        %534 = vdwg.mxu0
        %535 = vmatprep.subr.bf16.mxu0 0
        %536 = vmatpush1.bf16.msra.mxu0 0
        %537 = vmatprep.subr.bf16.mxu0 0
        %538 = vmatpush1.bf16.msra.mxu0 0
        %539 = vmatprep.subr.bf16.mxu0 0
        %540 = vmatpush1.bf16.msra.mxu0 0
        %541 = vmatprep.subr.bf16.mxu0 0
        %542 = vmatpush1.bf16.msra.mxu0 0
        %543 = vmatprep.subr.bf16.mxu0 0
        %544 = vmatpush1.bf16.msra.mxu0 0
        %545 = vmatprep.subr.bf16.mxu0 0
        %546 = vmatpush1.bf16.msra.mxu0 0
        %547 = vmatprep.subr.bf16.mxu0 0
        %548 = vmatpush1.bf16.msra.mxu0 0
        %549 = vmatprep.subr.bf16.mxu0 0
        %550 = vmatpush1.bf16.msra.mxu0 %v492
        %551 = vmatprep.subr.bf16.mxu0 0
        %552 = vmatpush2.bf16.msra.mxu0 0
        %553 = vmatprep.subr.bf16.mxu0 0
        %554 = vmatpush2.bf16.msra.mxu0 0
        %555 = vmatprep.subr.bf16.mxu0 0
        %556 = vmatpush2.bf16.msra.mxu0 0
        %557 = vmatprep.subr.bf16.mxu0 0
        %558 = vmatpush2.bf16.msra.mxu0 0
        %559 = vmatprep.subr.bf16.mxu0 0
        %560 = vmatpush2.bf16.msra.mxu0 0
        %561 = vmatprep.subr.bf16.mxu0 0
        %562 = vmatpush2.bf16.msra.mxu0 0
        %563 = vmatprep.subr.bf16.mxu0 0
        %564 = vmatpush2.bf16.msra.mxu0 0
        %565 = vmatprep.subr.bf16.mxu0 0
        %566 = vmatpush2.bf16.msra.mxu0 0
        %567 = vmatprep.mubr.bf16.mxu0 0
        %568 = vmatmul.mubr.bf16.gmra.mxu0 %v483
        %v569 = vpop.f32.mrf.mxu0
        %v570 = vadd.f32 0.0, %v569
        %v571 = vpop.f32.mrf.mxu0
        %v572 = vpop.f32.mrf.mxu0
        %v573 = vpop.f32.mrf.mxu0
        %574 = vdwg.mxu0
        %v575 = vadd.f32 %v407, %v529
        %v576 = vadd.f32 %v409, %v531
        %v577 = vadd.f32 %v448, %v570
        %v578 = vld [vmem:[%s229] sm:$0x3f]
        %s579 = scalar_lea.vmem %s1, 12
        %v580 = vld [vmem:[%s579] sm:$0xf]
        %v582 = vcombine.high %v578, %v578
        %v584 = vunpack.c.l.s4 1983009808
        %v585 = vunpack.c.0.s8 %v584
        %v586 = vlaneseq
        %v587 = vshrl.u32 %v586, 7
        %v588 = vsub.s32 %v585, %v587
        %v589 = vrot.slane %v578, %v588
        %v591 = vunpack.c.l.s4 1983009808
        %v592 = vunpack.c.0.s8 %v591
        %v593 = vlaneseq
        %v594 = vshrl.u32 %v593, 7
        %v595 = vsub.s32 %v592, %v594
        %v596 = vrot.slane %v582, %v595
        %v597 = vcombine.high %v589, %v589
        %598 = vrot.lane.b32.xlu0 %v589, 110
        %v599 = vpop.permute.xlu0 %598
        %600 = vrot.lane.b32.xlu0 %v597, 110
        %v601 = vpop.permute.xlu0 %600
        %602 = vrot.lane.b32.xlu0 %v596, 110
        %v603 = vpop.permute.xlu0 %602
        %vm604 = vcmask 900096
        %v605 = vsel %vm604, %v599, %v601
        %v606 = vsel %vm604, %v601, %v603
        %v608 = vsel %vm265, %v580, 0
        %v611 = vsel %vm269, %v605, 0
        %v614 = vsel %vm269, %v606, 0
        %v617 = vsel %vm269, %v603, 0
        %619 = vmatprep.subr.bf16.mxu0 0
        %620 = vmatpush1.bf16.msra.mxu0 0
        %621 = vmatprep.subr.bf16.mxu0 0
        %622 = vmatpush1.bf16.msra.mxu0 0
        %623 = vmatprep.subr.bf16.mxu0 0
        %624 = vmatpush1.bf16.msra.mxu0 0
        %625 = vmatprep.subr.bf16.mxu0 0
        %626 = vmatpush1.bf16.msra.mxu0 0
        %627 = vmatprep.subr.bf16.mxu0 0
        %628 = vmatpush1.bf16.msra.mxu0 0
        %629 = vmatprep.subr.bf16.mxu0 0
        %630 = vmatpush1.bf16.msra.mxu0 0
        %631 = vmatprep.subr.bf16.mxu0 0
        %632 = vmatpush1.bf16.msra.mxu0 0
        %633 = vmatprep.subr.bf16.mxu0 %v614
        %634 = vmatpush1.bf16.msra.mxu0 %v611
        %635 = vmatprep.subr.bf16.mxu0 0
        %636 = vmatpush2.bf16.msra.mxu0 0
        %637 = vmatprep.subr.bf16.mxu0 0
        %638 = vmatpush2.bf16.msra.mxu0 0
        %639 = vmatprep.subr.bf16.mxu0 0
        %640 = vmatpush2.bf16.msra.mxu0 0
        %641 = vmatprep.subr.bf16.mxu0 0
        %642 = vmatpush2.bf16.msra.mxu0 0
        %643 = vmatprep.subr.bf16.mxu0 0
        %644 = vmatpush2.bf16.msra.mxu0 0
        %645 = vmatprep.subr.bf16.mxu0 0
        %646 = vmatpush2.bf16.msra.mxu0 0
        %647 = vmatprep.subr.bf16.mxu0 0
        %648 = vmatpush2.bf16.msra.mxu0 0
        %649 = vmatprep.subr.bf16.mxu0 0
        %650 = vmatpush2.bf16.msra.mxu0 0
        %651 = vmatprep.mubr.bf16.mxu0 0
        %652 = vmatmul.mubr.bf16.gmra.mxu0 %v608
        %v653 = vpop.f32.mrf.mxu0
        %v654 = vadd.f32 0.0, %v653
        %v655 = vpop.f32.mrf.mxu0
        %v656 = vadd.f32 0.0, %v655
        %v657 = vpop.f32.mrf.mxu0
        %v658 = vpop.f32.mrf.mxu0
        %659 = vdwg.mxu0
        %660 = vmatprep.subr.bf16.mxu0 0
        %661 = vmatpush1.bf16.msra.mxu0 0
        %662 = vmatprep.subr.bf16.mxu0 0
        %663 = vmatpush1.bf16.msra.mxu0 0
        %664 = vmatprep.subr.bf16.mxu0 0
        %665 = vmatpush1.bf16.msra.mxu0 0
        %666 = vmatprep.subr.bf16.mxu0 0
        %667 = vmatpush1.bf16.msra.mxu0 0
        %668 = vmatprep.subr.bf16.mxu0 0
        %669 = vmatpush1.bf16.msra.mxu0 0
        %670 = vmatprep.subr.bf16.mxu0 0
        %671 = vmatpush1.bf16.msra.mxu0 0
        %672 = vmatprep.subr.bf16.mxu0 0
        %673 = vmatpush1.bf16.msra.mxu0 0
        %674 = vmatprep.subr.bf16.mxu0 0
        %675 = vmatpush1.bf16.msra.mxu0 %v617
        %676 = vmatprep.subr.bf16.mxu0 0
        %677 = vmatpush2.bf16.msra.mxu0 0
        %678 = vmatprep.subr.bf16.mxu0 0
        %679 = vmatpush2.bf16.msra.mxu0 0
        %680 = vmatprep.subr.bf16.mxu0 0
        %681 = vmatpush2.bf16.msra.mxu0 0
        %682 = vmatprep.subr.bf16.mxu0 0
        %683 = vmatpush2.bf16.msra.mxu0 0
        %684 = vmatprep.subr.bf16.mxu0 0
        %685 = vmatpush2.bf16.msra.mxu0 0
        %686 = vmatprep.subr.bf16.mxu0 0
        %687 = vmatpush2.bf16.msra.mxu0 0
        %688 = vmatprep.subr.bf16.mxu0 0
        %689 = vmatpush2.bf16.msra.mxu0 0
        %690 = vmatprep.subr.bf16.mxu0 0
        %691 = vmatpush2.bf16.msra.mxu0 0
        %692 = vmatprep.mubr.bf16.mxu0 0
        %693 = vmatmul.mubr.bf16.gmra.mxu0 %v608
        %v694 = vpop.f32.mrf.mxu0
        %v695 = vadd.f32 0.0, %v694
        %v696 = vpop.f32.mrf.mxu0
        %v697 = vpop.f32.mrf.mxu0
        %v698 = vpop.f32.mrf.mxu0
        %699 = vdwg.mxu0
        %v700 = vadd.f32 %v575, %v654
        %v701 = vadd.f32 %v576, %v656
        %v702 = vadd.f32 %v577, %v695
        %v703 = vld [vmem:[%s229] sm:$0x3f]
        %s704 = scalar_lea.vmem %s1, 16
        %v705 = vld [vmem:[%s704] sm:$0xf]
        %v707 = vcombine.high %v703, %v703
        %v709 = vunpack.c.l.s4 1983009808
        %v710 = vunpack.c.0.s8 %v709
        %v711 = vlaneseq
        %v712 = vshrl.u32 %v711, 7
        %v713 = vsub.s32 %v710, %v712
        %v714 = vrot.slane %v703, %v713
        %v716 = vunpack.c.l.s4 1983009808
        %v717 = vunpack.c.0.s8 %v716
        %v718 = vlaneseq
        %v719 = vshrl.u32 %v718, 7
        %v720 = vsub.s32 %v717, %v719
        %v721 = vrot.slane %v707, %v720
        %v722 = vcombine.high %v714, %v714
        %723 = vrot.lane.b32.xlu0 %v714, 109
        %v724 = vpop.permute.xlu0 %723
        %725 = vrot.lane.b32.xlu0 %v722, 109
        %v726 = vpop.permute.xlu0 %725
        %727 = vrot.lane.b32.xlu0 %v721, 109
        %v728 = vpop.permute.xlu0 %727
        %vm729 = vcmask 891904
        %v730 = vsel %vm729, %v724, %v726
        %v731 = vsel %vm729, %v726, %v728
        %v733 = vsel %vm265, %v705, 0
        %v736 = vsel %vm269, %v730, 0
        %v739 = vsel %vm269, %v731, 0
        %v742 = vsel %vm269, %v728, 0
        %744 = vmatprep.subr.bf16.mxu0 0
        %745 = vmatpush1.bf16.msra.mxu0 0
        %746 = vmatprep.subr.bf16.mxu0 0
        %747 = vmatpush1.bf16.msra.mxu0 0
        %748 = vmatprep.subr.bf16.mxu0 0
        %749 = vmatpush1.bf16.msra.mxu0 0
        %750 = vmatprep.subr.bf16.mxu0 0
        %751 = vmatpush1.bf16.msra.mxu0 0
        %752 = vmatprep.subr.bf16.mxu0 0
        %753 = vmatpush1.bf16.msra.mxu0 0
        %754 = vmatprep.subr.bf16.mxu0 0
        %755 = vmatpush1.bf16.msra.mxu0 0
        %756 = vmatprep.subr.bf16.mxu0 0
        %757 = vmatpush1.bf16.msra.mxu0 0
        %758 = vmatprep.subr.bf16.mxu0 %v739
        %759 = vmatpush1.bf16.msra.mxu0 %v736
        %760 = vmatprep.subr.bf16.mxu0 0
        %761 = vmatpush2.bf16.msra.mxu0 0
        %762 = vmatprep.subr.bf16.mxu0 0
        %763 = vmatpush2.bf16.msra.mxu0 0
        %764 = vmatprep.subr.bf16.mxu0 0
        %765 = vmatpush2.bf16.msra.mxu0 0
        %766 = vmatprep.subr.bf16.mxu0 0
        %767 = vmatpush2.bf16.msra.mxu0 0
        %768 = vmatprep.subr.bf16.mxu0 0
        %769 = vmatpush2.bf16.msra.mxu0 0
        %770 = vmatprep.subr.bf16.mxu0 0
        %771 = vmatpush2.bf16.msra.mxu0 0
        %772 = vmatprep.subr.bf16.mxu0 0
        %773 = vmatpush2.bf16.msra.mxu0 0
        %774 = vmatprep.subr.bf16.mxu0 0
        %775 = vmatpush2.bf16.msra.mxu0 0
        %776 = vmatprep.mubr.bf16.mxu0 0
        %777 = vmatmul.mubr.bf16.gmra.mxu0 %v733
        %v778 = vpop.f32.mrf.mxu0
        %v779 = vadd.f32 0.0, %v778
        %v780 = vpop.f32.mrf.mxu0
        %v781 = vadd.f32 0.0, %v780
        %v782 = vpop.f32.mrf.mxu0
        %v783 = vpop.f32.mrf.mxu0
        %784 = vdwg.mxu0
        %785 = vmatprep.subr.bf16.mxu0 0
        %786 = vmatpush1.bf16.msra.mxu0 0
        %787 = vmatprep.subr.bf16.mxu0 0
        %788 = vmatpush1.bf16.msra.mxu0 0
        %789 = vmatprep.subr.bf16.mxu0 0
        %790 = vmatpush1.bf16.msra.mxu0 0
        %791 = vmatprep.subr.bf16.mxu0 0
        %792 = vmatpush1.bf16.msra.mxu0 0
        %793 = vmatprep.subr.bf16.mxu0 0
        %794 = vmatpush1.bf16.msra.mxu0 0
        %795 = vmatprep.subr.bf16.mxu0 0
        %796 = vmatpush1.bf16.msra.mxu0 0
        %797 = vmatprep.subr.bf16.mxu0 0
        %798 = vmatpush1.bf16.msra.mxu0 0
        %799 = vmatprep.subr.bf16.mxu0 0
        %800 = vmatpush1.bf16.msra.mxu0 %v742
        %801 = vmatprep.subr.bf16.mxu0 0
        %802 = vmatpush2.bf16.msra.mxu0 0
        %803 = vmatprep.subr.bf16.mxu0 0
        %804 = vmatpush2.bf16.msra.mxu0 0
        %805 = vmatprep.subr.bf16.mxu0 0
        %806 = vmatpush2.bf16.msra.mxu0 0
        %807 = vmatprep.subr.bf16.mxu0 0
        %808 = vmatpush2.bf16.msra.mxu0 0
        %809 = vmatprep.subr.bf16.mxu0 0
        %810 = vmatpush2.bf16.msra.mxu0 0
        %811 = vmatprep.subr.bf16.mxu0 0
        %812 = vmatpush2.bf16.msra.mxu0 0
        %813 = vmatprep.subr.bf16.mxu0 0
        %814 = vmatpush2.bf16.msra.mxu0 0
        %815 = vmatprep.subr.bf16.mxu0 0
        %816 = vmatpush2.bf16.msra.mxu0 0
        %817 = vmatprep.mubr.bf16.mxu0 0
        %818 = vmatmul.mubr.bf16.gmra.mxu0 %v733
        %v819 = vpop.f32.mrf.mxu0
        %v820 = vadd.f32 0.0, %v819
        %v821 = vpop.f32.mrf.mxu0
        %v822 = vpop.f32.mrf.mxu0
        %v823 = vpop.f32.mrf.mxu0
        %824 = vdwg.mxu0
        %v825 = vadd.f32 %v700, %v779
        %v826 = vadd.f32 %v701, %v781
        %v827 = vadd.f32 %v702, %v820
        %v828 = vld [vmem:[%s229] sm:$0x3f]
        %s829 = scalar_lea.vmem %s1, 20
        %v830 = vld [vmem:[%s829] sm:$0xf]
        %v832 = vcombine.high %v828, %v828
        %v834 = vunpack.c.l.s4 1983009808
        %v835 = vunpack.c.0.s8 %v834
        %v836 = vlaneseq
        %v837 = vshrl.u32 %v836, 7
        %v838 = vsub.s32 %v835, %v837
        %v839 = vrot.slane %v828, %v838
        %v841 = vunpack.c.l.s4 1983009808
        %v842 = vunpack.c.0.s8 %v841
        %v843 = vlaneseq
        %v844 = vshrl.u32 %v843, 7
        %v845 = vsub.s32 %v842, %v844
        %v846 = vrot.slane %v832, %v845
        %v847 = vcombine.high %v839, %v839
        %848 = vrot.lane.b32.xlu0 %v839, 108
        %v849 = vpop.permute.xlu0 %848
        %850 = vrot.lane.b32.xlu0 %v847, 108
        %v851 = vpop.permute.xlu0 %850
        %852 = vrot.lane.b32.xlu0 %v846, 108
        %v853 = vpop.permute.xlu0 %852
        %vm854 = vcmask 883712
        %v855 = vsel %vm854, %v849, %v851
        %v856 = vsel %vm854, %v851, %v853
        %v858 = vsel %vm265, %v830, 0
        %v861 = vsel %vm269, %v855, 0
        %v864 = vsel %vm269, %v856, 0
        %v867 = vsel %vm269, %v853, 0
        %869 = vmatprep.subr.bf16.mxu0 0
        %870 = vmatpush1.bf16.msra.mxu0 0
        %871 = vmatprep.subr.bf16.mxu0 0
        %872 = vmatpush1.bf16.msra.mxu0 0
        %873 = vmatprep.subr.bf16.mxu0 0
        %874 = vmatpush1.bf16.msra.mxu0 0
        %875 = vmatprep.subr.bf16.mxu0 0
        %876 = vmatpush1.bf16.msra.mxu0 0
        %877 = vmatprep.subr.bf16.mxu0 0
        %878 = vmatpush1.bf16.msra.mxu0 0
        %879 = vmatprep.subr.bf16.mxu0 0
        %880 = vmatpush1.bf16.msra.mxu0 0
        %881 = vmatprep.subr.bf16.mxu0 0
        %882 = vmatpush1.bf16.msra.mxu0 0
        %883 = vmatprep.subr.bf16.mxu0 %v864
        %884 = vmatpush1.bf16.msra.mxu0 %v861
        %885 = vmatprep.subr.bf16.mxu0 0
        %886 = vmatpush2.bf16.msra.mxu0 0
        %887 = vmatprep.subr.bf16.mxu0 0
        %888 = vmatpush2.bf16.msra.mxu0 0
        %889 = vmatprep.subr.bf16.mxu0 0
        %890 = vmatpush2.bf16.msra.mxu0 0
        %891 = vmatprep.subr.bf16.mxu0 0
        %892 = vmatpush2.bf16.msra.mxu0 0
        %893 = vmatprep.subr.bf16.mxu0 0
        %894 = vmatpush2.bf16.msra.mxu0 0
        %895 = vmatprep.subr.bf16.mxu0 0
        %896 = vmatpush2.bf16.msra.mxu0 0
        %897 = vmatprep.subr.bf16.mxu0 0
        %898 = vmatpush2.bf16.msra.mxu0 0
        %899 = vmatprep.subr.bf16.mxu0 0
        %900 = vmatpush2.bf16.msra.mxu0 0
        %901 = vmatprep.mubr.bf16.mxu0 0
        %902 = vmatmul.mubr.bf16.gmra.mxu0 %v858
        %v903 = vpop.f32.mrf.mxu0
        %v904 = vadd.f32 0.0, %v903
        %v905 = vpop.f32.mrf.mxu0
        %v906 = vadd.f32 0.0, %v905
        %v907 = vpop.f32.mrf.mxu0
        %v908 = vpop.f32.mrf.mxu0
        %909 = vdwg.mxu0
        %910 = vmatprep.subr.bf16.mxu0 0
        %911 = vmatpush1.bf16.msra.mxu0 0
        %912 = vmatprep.subr.bf16.mxu0 0
        %913 = vmatpush1.bf16.msra.mxu0 0
        %914 = vmatprep.subr.bf16.mxu0 0
        %915 = vmatpush1.bf16.msra.mxu0 0
        %916 = vmatprep.subr.bf16.mxu0 0
        %917 = vmatpush1.bf16.msra.mxu0 0
        %918 = vmatprep.subr.bf16.mxu0 0
        %919 = vmatpush1.bf16.msra.mxu0 0
        %920 = vmatprep.subr.bf16.mxu0 0
        %921 = vmatpush1.bf16.msra.mxu0 0
        %922 = vmatprep.subr.bf16.mxu0 0
        %923 = vmatpush1.bf16.msra.mxu0 0
        %924 = vmatprep.subr.bf16.mxu0 0
        %925 = vmatpush1.bf16.msra.mxu0 %v867
        %926 = vmatprep.subr.bf16.mxu0 0
        %927 = vmatpush2.bf16.msra.mxu0 0
        %928 = vmatprep.subr.bf16.mxu0 0
        %929 = vmatpush2.bf16.msra.mxu0 0
        %930 = vmatprep.subr.bf16.mxu0 0
        %931 = vmatpush2.bf16.msra.mxu0 0
        %932 = vmatprep.subr.bf16.mxu0 0
        %933 = vmatpush2.bf16.msra.mxu0 0
        %934 = vmatprep.subr.bf16.mxu0 0
        %935 = vmatpush2.bf16.msra.mxu0 0
        %936 = vmatprep.subr.bf16.mxu0 0
        %937 = vmatpush2.bf16.msra.mxu0 0
        %938 = vmatprep.subr.bf16.mxu0 0
        %939 = vmatpush2.bf16.msra.mxu0 0
        %940 = vmatprep.subr.bf16.mxu0 0
        %941 = vmatpush2.bf16.msra.mxu0 0
        %942 = vmatprep.mubr.bf16.mxu0 0
        %943 = vmatmul.mubr.bf16.gmra.mxu0 %v858
        %v944 = vpop.f32.mrf.mxu0
        %v945 = vadd.f32 0.0, %v944
        %v946 = vpop.f32.mrf.mxu0
        %v947 = vpop.f32.mrf.mxu0
        %v948 = vpop.f32.mrf.mxu0
        %949 = vdwg.mxu0
        %v950 = vadd.f32 %v825, %v904
        %v951 = vadd.f32 %v826, %v906
        %v952 = vadd.f32 %v827, %v945
        %v953 = vld [vmem:[%s229] sm:$0x3f]
        %s954 = scalar_lea.vmem %s1, 24
        %v955 = vld [vmem:[%s954] sm:$0xf]
        %v957 = vcombine.high %v953, %v953
        %v959 = vunpack.c.l.s4 1983009808
        %v960 = vunpack.c.0.s8 %v959
        %v961 = vlaneseq
        %v962 = vshrl.u32 %v961, 7
        %v963 = vsub.s32 %v960, %v962
        %v964 = vrot.slane %v953, %v963
        %v966 = vunpack.c.l.s4 1983009808
        %v967 = vunpack.c.0.s8 %v966
        %v968 = vlaneseq
        %v969 = vshrl.u32 %v968, 7
        %v970 = vsub.s32 %v967, %v969
        %v971 = vrot.slane %v957, %v970
        %v972 = vcombine.high %v964, %v964
        %973 = vrot.lane.b32.xlu0 %v964, 92
        %v974 = vpop.permute.xlu0 %973
        %975 = vrot.lane.b32.xlu0 %v972, 92
        %v976 = vpop.permute.xlu0 %975
        %977 = vrot.lane.b32.xlu0 %v971, 92
        %v978 = vpop.permute.xlu0 %977
        %vm979 = vcmask 752640
        %v980 = vsel %vm979, %v974, %v976
        %v981 = vsel %vm979, %v976, %v978
        %v983 = vsel %vm265, %v955, 0
        %v986 = vsel %vm269, %v980, 0
        %v989 = vsel %vm269, %v981, 0
        %v992 = vsel %vm269, %v978, 0
        %994 = vmatprep.subr.bf16.mxu0 0
        %995 = vmatpush1.bf16.msra.mxu0 0
        %996 = vmatprep.subr.bf16.mxu0 0
        %997 = vmatpush1.bf16.msra.mxu0 0
        %998 = vmatprep.subr.bf16.mxu0 0
        %999 = vmatpush1.bf16.msra.mxu0 0
        %1000 = vmatprep.subr.bf16.mxu0 0
        %1001 = vmatpush1.bf16.msra.mxu0 0
        %1002 = vmatprep.subr.bf16.mxu0 0
        %1003 = vmatpush1.bf16.msra.mxu0 0
        %1004 = vmatprep.subr.bf16.mxu0 0
        %1005 = vmatpush1.bf16.msra.mxu0 0
        %1006 = vmatprep.subr.bf16.mxu0 0
        %1007 = vmatpush1.bf16.msra.mxu0 0
        %1008 = vmatprep.subr.bf16.mxu0 %v989
        %1009 = vmatpush1.bf16.msra.mxu0 %v986
        %1010 = vmatprep.subr.bf16.mxu0 0
        %1011 = vmatpush2.bf16.msra.mxu0 0
        %1012 = vmatprep.subr.bf16.mxu0 0
        %1013 = vmatpush2.bf16.msra.mxu0 0
        %1014 = vmatprep.subr.bf16.mxu0 0
        %1015 = vmatpush2.bf16.msra.mxu0 0
        %1016 = vmatprep.subr.bf16.mxu0 0
        %1017 = vmatpush2.bf16.msra.mxu0 0
        %1018 = vmatprep.subr.bf16.mxu0 0
        %1019 = vmatpush2.bf16.msra.mxu0 0
        %1020 = vmatprep.subr.bf16.mxu0 0
        %1021 = vmatpush2.bf16.msra.mxu0 0
        %1022 = vmatprep.subr.bf16.mxu0 0
        %1023 = vmatpush2.bf16.msra.mxu0 0
        %1024 = vmatprep.subr.bf16.mxu0 0
        %1025 = vmatpush2.bf16.msra.mxu0 0
        %1026 = vmatprep.mubr.bf16.mxu0 0
        %1027 = vmatmul.mubr.bf16.gmra.mxu0 %v983
        %v1028 = vpop.f32.mrf.mxu0
        %v1029 = vadd.f32 0.0, %v1028
        %v1030 = vpop.f32.mrf.mxu0
        %v1031 = vadd.f32 0.0, %v1030
        %v1032 = vpop.f32.mrf.mxu0
        %v1033 = vpop.f32.mrf.mxu0
        %1034 = vdwg.mxu0
        %1035 = vmatprep.subr.bf16.mxu0 0
        %1036 = vmatpush1.bf16.msra.mxu0 0
        %1037 = vmatprep.subr.bf16.mxu0 0
        %1038 = vmatpush1.bf16.msra.mxu0 0
        %1039 = vmatprep.subr.bf16.mxu0 0
        %1040 = vmatpush1.bf16.msra.mxu0 0
        %1041 = vmatprep.subr.bf16.mxu0 0
        %1042 = vmatpush1.bf16.msra.mxu0 0
        %1043 = vmatprep.subr.bf16.mxu0 0
        %1044 = vmatpush1.bf16.msra.mxu0 0
        %1045 = vmatprep.subr.bf16.mxu0 0
        %1046 = vmatpush1.bf16.msra.mxu0 0
        %1047 = vmatprep.subr.bf16.mxu0 0
        %1048 = vmatpush1.bf16.msra.mxu0 0
        %1049 = vmatprep.subr.bf16.mxu0 0
        %1050 = vmatpush1.bf16.msra.mxu0 %v992
        %1051 = vmatprep.subr.bf16.mxu0 0
        %1052 = vmatpush2.bf16.msra.mxu0 0
        %1053 = vmatprep.subr.bf16.mxu0 0
        %1054 = vmatpush2.bf16.msra.mxu0 0
        %1055 = vmatprep.subr.bf16.mxu0 0
        %1056 = vmatpush2.bf16.msra.mxu0 0
        %1057 = vmatprep.subr.bf16.mxu0 0
        %1058 = vmatpush2.bf16.msra.mxu0 0
        %1059 = vmatprep.subr.bf16.mxu0 0
        %1060 = vmatpush2.bf16.msra.mxu0 0
        %1061 = vmatprep.subr.bf16.mxu0 0
        %1062 = vmatpush2.bf16.msra.mxu0 0
        %1063 = vmatprep.subr.bf16.mxu0 0
        %1064 = vmatpush2.bf16.msra.mxu0 0
        %1065 = vmatprep.subr.bf16.mxu0 0
        %1066 = vmatpush2.bf16.msra.mxu0 0
        %1067 = vmatprep.mubr.bf16.mxu0 0
        %1068 = vmatmul.mubr.bf16.gmra.mxu0 %v983
        %v1069 = vpop.f32.mrf.mxu0
        %v1070 = vadd.f32 0.0, %v1069
        %v1071 = vpop.f32.mrf.mxu0
        %v1072 = vpop.f32.mrf.mxu0
        %v1073 = vpop.f32.mrf.mxu0
        %1074 = vdwg.mxu0
        %v1075 = vadd.f32 %v950, %v1029
        %v1076 = vadd.f32 %v951, %v1031
        %v1077 = vadd.f32 %v952, %v1070
        %v1078 = vld [vmem:[%s229] sm:$0x3f]
        %s1079 = scalar_lea.vmem %s1, 28
        %v1080 = vld [vmem:[%s1079] sm:$0xf]
        %v1082 = vcombine.high %v1078, %v1078
        %v1084 = vunpack.c.l.s4 1983009808
        %v1085 = vunpack.c.0.s8 %v1084
        %v1086 = vlaneseq
        %v1087 = vshrl.u32 %v1086, 7
        %v1088 = vsub.s32 %v1085, %v1087
        %v1089 = vrot.slane %v1078, %v1088
        %v1091 = vunpack.c.l.s4 1983009808
        %v1092 = vunpack.c.0.s8 %v1091
        %v1093 = vlaneseq
        %v1094 = vshrl.u32 %v1093, 7
        %v1095 = vsub.s32 %v1092, %v1094
        %v1096 = vrot.slane %v1082, %v1095
        %v1097 = vcombine.high %v1089, %v1089
        %1098 = vrot.lane.b32.xlu0 %v1089, 91
        %v1099 = vpop.permute.xlu0 %1098
        %1100 = vrot.lane.b32.xlu0 %v1097, 91
        %v1101 = vpop.permute.xlu0 %1100
        %1102 = vrot.lane.b32.xlu0 %v1096, 91
        %v1103 = vpop.permute.xlu0 %1102
        %vm1104 = vcmask 744448
        %v1105 = vsel %vm1104, %v1099, %v1101
        %v1106 = vsel %vm1104, %v1101, %v1103
        %v1108 = vsel %vm265, %v1080, 0
        %v1111 = vsel %vm269, %v1105, 0
        %v1114 = vsel %vm269, %v1106, 0
        %v1117 = vsel %vm269, %v1103, 0
        %1119 = vmatprep.subr.bf16.mxu0 0
        %1120 = vmatpush1.bf16.msra.mxu0 0
        %1121 = vmatprep.subr.bf16.mxu0 0
        %1122 = vmatpush1.bf16.msra.mxu0 0
        %1123 = vmatprep.subr.bf16.mxu0 0
        %1124 = vmatpush1.bf16.msra.mxu0 0
        %1125 = vmatprep.subr.bf16.mxu0 0
        %1126 = vmatpush1.bf16.msra.mxu0 0
        %1127 = vmatprep.subr.bf16.mxu0 0
        %1128 = vmatpush1.bf16.msra.mxu0 0
        %1129 = vmatprep.subr.bf16.mxu0 0
        %1130 = vmatpush1.bf16.msra.mxu0 0
        %1131 = vmatprep.subr.bf16.mxu0 0
        %1132 = vmatpush1.bf16.msra.mxu0 0
        %1133 = vmatprep.subr.bf16.mxu0 %v1114
        %1134 = vmatpush1.bf16.msra.mxu0 %v1111
        %1135 = vmatprep.subr.bf16.mxu0 0
        %1136 = vmatpush2.bf16.msra.mxu0 0
        %1137 = vmatprep.subr.bf16.mxu0 0
        %1138 = vmatpush2.bf16.msra.mxu0 0
        %1139 = vmatprep.subr.bf16.mxu0 0
        %1140 = vmatpush2.bf16.msra.mxu0 0
        %1141 = vmatprep.subr.bf16.mxu0 0
        %1142 = vmatpush2.bf16.msra.mxu0 0
        %1143 = vmatprep.subr.bf16.mxu0 0
        %1144 = vmatpush2.bf16.msra.mxu0 0
        %1145 = vmatprep.subr.bf16.mxu0 0
        %1146 = vmatpush2.bf16.msra.mxu0 0
        %1147 = vmatprep.subr.bf16.mxu0 0
        %1148 = vmatpush2.bf16.msra.mxu0 0
        %1149 = vmatprep.subr.bf16.mxu0 0
        %1150 = vmatpush2.bf16.msra.mxu0 0
        %1151 = vmatprep.mubr.bf16.mxu0 0
        %1152 = vmatmul.mubr.bf16.gmra.mxu0 %v1108
        %v1153 = vpop.f32.mrf.mxu0
        %v1154 = vadd.f32 0.0, %v1153
        %v1155 = vpop.f32.mrf.mxu0
        %v1156 = vadd.f32 0.0, %v1155
        %v1157 = vpop.f32.mrf.mxu0
        %v1158 = vpop.f32.mrf.mxu0
        %1159 = vdwg.mxu0
        %1160 = vmatprep.subr.bf16.mxu0 0
        %1161 = vmatpush1.bf16.msra.mxu0 0
        %1162 = vmatprep.subr.bf16.mxu0 0
        %1163 = vmatpush1.bf16.msra.mxu0 0
        %1164 = vmatprep.subr.bf16.mxu0 0
        %1165 = vmatpush1.bf16.msra.mxu0 0
        %1166 = vmatprep.subr.bf16.mxu0 0
        %1167 = vmatpush1.bf16.msra.mxu0 0
        %1168 = vmatprep.subr.bf16.mxu0 0
        %1169 = vmatpush1.bf16.msra.mxu0 0
        %1170 = vmatprep.subr.bf16.mxu0 0
        %1171 = vmatpush1.bf16.msra.mxu0 0
        %1172 = vmatprep.subr.bf16.mxu0 0
        %1173 = vmatpush1.bf16.msra.mxu0 0
        %1174 = vmatprep.subr.bf16.mxu0 0
        %1175 = vmatpush1.bf16.msra.mxu0 %v1117
        %1176 = vmatprep.subr.bf16.mxu0 0
        %1177 = vmatpush2.bf16.msra.mxu0 0
        %1178 = vmatprep.subr.bf16.mxu0 0
        %1179 = vmatpush2.bf16.msra.mxu0 0
        %1180 = vmatprep.subr.bf16.mxu0 0
        %1181 = vmatpush2.bf16.msra.mxu0 0
        %1182 = vmatprep.subr.bf16.mxu0 0
        %1183 = vmatpush2.bf16.msra.mxu0 0
        %1184 = vmatprep.subr.bf16.mxu0 0
        %1185 = vmatpush2.bf16.msra.mxu0 0
        %1186 = vmatprep.subr.bf16.mxu0 0
        %1187 = vmatpush2.bf16.msra.mxu0 0
        %1188 = vmatprep.subr.bf16.mxu0 0
        %1189 = vmatpush2.bf16.msra.mxu0 0
        %1190 = vmatprep.subr.bf16.mxu0 0
        %1191 = vmatpush2.bf16.msra.mxu0 0
        %1192 = vmatprep.mubr.bf16.mxu0 0
        %1193 = vmatmul.mubr.bf16.gmra.mxu0 %v1108
        %v1194 = vpop.f32.mrf.mxu0
        %v1195 = vadd.f32 0.0, %v1194
        %v1196 = vpop.f32.mrf.mxu0
        %v1197 = vpop.f32.mrf.mxu0
        %v1198 = vpop.f32.mrf.mxu0
        %1199 = vdwg.mxu0
        %v1200 = vadd.f32 %v1075, %v1154
        %v1201 = vadd.f32 %v1076, %v1156
        %v1202 = vadd.f32 %v1077, %v1195
        %v1203 = vld [vmem:[%s229] sm:$0x3f]
        %s1204 = scalar_lea.vmem %s1, 32
        %v1205 = vld [vmem:[%s1204] sm:$0xf]
        %v1207 = vcombine.high %v1203, %v1203
        %v1209 = vunpack.c.l.s4 1983009808
        %v1210 = vunpack.c.0.s8 %v1209
        %v1211 = vlaneseq
        %v1212 = vshrl.u32 %v1211, 7
        %v1213 = vsub.s32 %v1210, %v1212
        %v1214 = vrot.slane %v1203, %v1213
        %v1216 = vunpack.c.l.s4 1983009808
        %v1217 = vunpack.c.0.s8 %v1216
        %v1218 = vlaneseq
        %v1219 = vshrl.u32 %v1218, 7
        %v1220 = vsub.s32 %v1217, %v1219
        %v1221 = vrot.slane %v1207, %v1220
        %v1222 = vcombine.high %v1214, %v1214
        %1223 = vrot.lane.b32.xlu0 %v1214, 90
        %v1224 = vpop.permute.xlu0 %1223
        %1225 = vrot.lane.b32.xlu0 %v1222, 90
        %v1226 = vpop.permute.xlu0 %1225
        %1227 = vrot.lane.b32.xlu0 %v1221, 90
        %v1228 = vpop.permute.xlu0 %1227
        %vm1229 = vcmask 736256
        %v1230 = vsel %vm1229, %v1224, %v1226
        %v1231 = vsel %vm1229, %v1226, %v1228
        %v1233 = vsel %vm265, %v1205, 0
        %v1236 = vsel %vm269, %v1230, 0
        %v1239 = vsel %vm269, %v1231, 0
        %v1242 = vsel %vm269, %v1228, 0
        %1244 = vmatprep.subr.bf16.mxu0 0
        %1245 = vmatpush1.bf16.msra.mxu0 0
        %1246 = vmatprep.subr.bf16.mxu0 0
        %1247 = vmatpush1.bf16.msra.mxu0 0
        %1248 = vmatprep.subr.bf16.mxu0 0
        %1249 = vmatpush1.bf16.msra.mxu0 0
        %1250 = vmatprep.subr.bf16.mxu0 0
        %1251 = vmatpush1.bf16.msra.mxu0 0
        %1252 = vmatprep.subr.bf16.mxu0 0
        %1253 = vmatpush1.bf16.msra.mxu0 0
        %1254 = vmatprep.subr.bf16.mxu0 0
        %1255 = vmatpush1.bf16.msra.mxu0 0
        %1256 = vmatprep.subr.bf16.mxu0 0
        %1257 = vmatpush1.bf16.msra.mxu0 0
        %1258 = vmatprep.subr.bf16.mxu0 %v1239
        %1259 = vmatpush1.bf16.msra.mxu0 %v1236
        %1260 = vmatprep.subr.bf16.mxu0 0
        %1261 = vmatpush2.bf16.msra.mxu0 0
        %1262 = vmatprep.subr.bf16.mxu0 0
        %1263 = vmatpush2.bf16.msra.mxu0 0
        %1264 = vmatprep.subr.bf16.mxu0 0
        %1265 = vmatpush2.bf16.msra.mxu0 0
        %1266 = vmatprep.subr.bf16.mxu0 0
        %1267 = vmatpush2.bf16.msra.mxu0 0
        %1268 = vmatprep.subr.bf16.mxu0 0
        %1269 = vmatpush2.bf16.msra.mxu0 0
        %1270 = vmatprep.subr.bf16.mxu0 0
        %1271 = vmatpush2.bf16.msra.mxu0 0
        %1272 = vmatprep.subr.bf16.mxu0 0
        %1273 = vmatpush2.bf16.msra.mxu0 0
        %1274 = vmatprep.subr.bf16.mxu0 0
        %1275 = vmatpush2.bf16.msra.mxu0 0
        %1276 = vmatprep.mubr.bf16.mxu0 0
        %1277 = vmatmul.mubr.bf16.gmra.mxu0 %v1233
        %v1278 = vpop.f32.mrf.mxu0
        %v1279 = vadd.f32 0.0, %v1278
        %v1280 = vpop.f32.mrf.mxu0
        %v1281 = vadd.f32 0.0, %v1280
        %v1282 = vpop.f32.mrf.mxu0
        %v1283 = vpop.f32.mrf.mxu0
        %1284 = vdwg.mxu0
        %1285 = vmatprep.subr.bf16.mxu0 0
        %1286 = vmatpush1.bf16.msra.mxu0 0
        %1287 = vmatprep.subr.bf16.mxu0 0
        %1288 = vmatpush1.bf16.msra.mxu0 0
        %1289 = vmatprep.subr.bf16.mxu0 0
        %1290 = vmatpush1.bf16.msra.mxu0 0
        %1291 = vmatprep.subr.bf16.mxu0 0
        %1292 = vmatpush1.bf16.msra.mxu0 0
        %1293 = vmatprep.subr.bf16.mxu0 0
        %1294 = vmatpush1.bf16.msra.mxu0 0
        %1295 = vmatprep.subr.bf16.mxu0 0
        %1296 = vmatpush1.bf16.msra.mxu0 0
        %1297 = vmatprep.subr.bf16.mxu0 0
        %1298 = vmatpush1.bf16.msra.mxu0 0
        %1299 = vmatprep.subr.bf16.mxu0 0
        %1300 = vmatpush1.bf16.msra.mxu0 %v1242
        %1301 = vmatprep.subr.bf16.mxu0 0
        %1302 = vmatpush2.bf16.msra.mxu0 0
        %1303 = vmatprep.subr.bf16.mxu0 0
        %1304 = vmatpush2.bf16.msra.mxu0 0
        %1305 = vmatprep.subr.bf16.mxu0 0
        %1306 = vmatpush2.bf16.msra.mxu0 0
        %1307 = vmatprep.subr.bf16.mxu0 0
        %1308 = vmatpush2.bf16.msra.mxu0 0
        %1309 = vmatprep.subr.bf16.mxu0 0
        %1310 = vmatpush2.bf16.msra.mxu0 0
        %1311 = vmatprep.subr.bf16.mxu0 0
        %1312 = vmatpush2.bf16.msra.mxu0 0
        %1313 = vmatprep.subr.bf16.mxu0 0
        %1314 = vmatpush2.bf16.msra.mxu0 0
        %1315 = vmatprep.subr.bf16.mxu0 0
        %1316 = vmatpush2.bf16.msra.mxu0 0
        %1317 = vmatprep.mubr.bf16.mxu0 0
        %1318 = vmatmul.mubr.bf16.gmra.mxu0 %v1233
        %v1319 = vpop.f32.mrf.mxu0
        %v1320 = vadd.f32 0.0, %v1319
        %v1321 = vpop.f32.mrf.mxu0
        %v1322 = vpop.f32.mrf.mxu0
        %v1323 = vpop.f32.mrf.mxu0
        %1324 = vdwg.mxu0
        %v1325 = vadd.f32 %v1200, %v1279
        %v1326 = vadd.f32 %v1201, %v1281
        %v1327 = vadd.f32 %v1202, %v1320
        %v1328 = vld [vmem:[%s3] sm:$0x7]
        %v1330 = vlaneseq
        %v1331 = vshrl.u32 %v1330, 7
        %v1332 = vsub.s32 0, %v1331
        %v1333 = vrot.slane %v1328, %v1332
        %v1334 = vlaneseq
        %v1335 = vshrl.u32 %v1334, 7
        %v1336 = vsub.s32 1, %v1335
        %v1337 = vrot.slane %v1328, %v1336
        %v1338 = vlaneseq
        %v1339 = vshrl.u32 %v1338, 7
        %v1340 = vsub.s32 2, %v1339
        %v1341 = vrot.slane %v1328, %v1340
        %v1345 = vmul.f32 %v1325, %v1333
        %v1346 = vmul.f32 %v1326, %v1337
        %v1347 = vmul.f32 %v1327, %v1341
        %v1348 = vadd.f32 %v1345, %v1346
        %vm1349 = vcmask 261120
        %v1350 = vsel %vm1349, %v1347, 0.0
        %v1351 = vadd.f32 %v1348, %v1350
        %1352 = vadd.xlane.f32.xlu0 %v1351
        %v1353 = vpop.xlane.xlu0 %1352
        %v1354 = vmul.f32 %v1345, %v1325
        %v1355 = vmul.f32 %v1346, %v1326
        %v1356 = vmul.f32 %v1347, %v1327
        %v1357 = vadd.f32 %v1354, %v1355
        %v1358 = vsel %vm1349, %v1356, 0.0
        %v1359 = vadd.f32 %v1357, %v1358
        %1360 = vadd.xlane.f32.xlu0 %v1359
        %v1361 = vpop.xlane.xlu0 %1360
        %v1362 = vlaneseq
        %v1363 = vand.u32 %v1362, 127
        %vm1364 = vcmp.eq.s32.totalorder %v1363, 0
        %v1365 = vsel %vm1364, %v1353, %v1361
        %vm1366 = vcmask 15360
        %1367 = vst.msk [vmem:[%s233] sm:$0xff] %vm1366, %v1365
        %v1368 = vld [vmem:[%s2] sm:$0xff]
        %1370 = vset.pattern.permute.xlu0 0
        %1371 = vperm.xlu0 %1370, %v1368
        %v1372 = vpop.permute.xlu0 %1371
        %v1374 = vadd.f32 %v1325, %v1372
        %v1375 = vadd.f32 %v1326, %v1372
        %v1376 = vadd.f32 %v1327, %v1372
        %v1377 = vpack.c.bf16 %v1374, %v1374
        %v1378 = vpack.c.bf16 %v1375, %v1375
        %v1379 = vpack.c.bf16 %v1376, %v1376
        %v1383 = vunpack.c.l.b16 %v1377
        %v1384 = vunpack.c.l.b16 %v1378
        %v1385 = vunpack.c.l.b16 %v1379
        %v1386 = vpack.c.b16 %v1384, %v1383
        %v1387 = vpack.c.b16 %v1385, %v1385
        %1390 = vst [vmem:[%s218] sm:$0xff] %v1386
        %vm1391 = vcmask 257024
        %1392 = vst.msk [vmem:[%s218 + $0x8] sm:$0xf] %vm1391, %v1387
        %s1393 = sand.u32 %s117, 1
        %s1394 = scalar_lea.sflag [#allocation3], %s1393
        %s1395 = sand.u32 %s117, 1
        %s1396 = smul.addr %s1395, 12
        %s1397 = scalar_lea.vmem [#allocation2], %s1396
        %p1398 = scmp.lt.s32.totalorder %s20, 1
        %s1399 = scalar_select %p1398, %s20, 1
        %s1400 = smul.addr %s1399, 8
        %s1401 = scalar_lea.vmem %s5, %s1400
        // Predicated region
        $region37: #{tpu_custom_call.1} parent=35 // pred_check
          %p1402 = pneg %p127
        $region38: #{tpu_custom_call.1} parent=35 // pred_check_branch
          %1404 = sbr.rel (%p1402) target = $region40
        $region39: #{tpu_custom_call.1} parent=35 // pred_region
          %s1406 = ssub.s32 192, 192
          %1407 = vsyncadd %s1394, %s1406
          %s1408 = smul.addr %s20, 3
          %s1409 = smul.addr %s1408, 64
          %s1410 = scalar_lea.hbm %s4, %s1409
          %s1412 = sshll.u32 %s1397, 4
          %s1413 = int_to_ptr.vmem [resolvable:$true] %s1412
          %1415 = dma.vmem_to_hbm [thread:$0]  %s1413, 192, %s1410, %s1394
        $region40: #{tpu_custom_call.1} parent=35 // pred_fallthru
          _
        // Predicated region
        $region41: #{tpu_custom_call.1} parent=35 // pred_check
          %p1416 = pneg %p153
        $region42: #{tpu_custom_call.1} parent=35 // pred_check_branch
          %1418 = sbr.rel (%p1416) target = $region44
        $region43: #{tpu_custom_call.1} parent=35 // pred_region
          _
        $region44: #{tpu_custom_call.1} parent=35 // pred_fallthru
          _
      $region36: #{tpu_custom_call.1} parent=5 // pred_fallthru
        _
      %p1419 = scmp.le.s32.totalorder 2, %s15
      // Predicated region
      $region45: #{tpu_custom_call.1} parent=5 // pred_check
        %p1420 = pneg %p1419
      $region46: #{tpu_custom_call.1} parent=5 // pred_check_branch
        %1422 = sbr.rel (%p1420) target = $region48
      $region47: #{tpu_custom_call.1} parent=5 // pred_region
        %s1423 = ssub.s32 %s15, 2
        // Predicated region
        $region49: #{tpu_custom_call.1} parent=47 // pred_check
          %p1424 = pneg %p133
        $region50: #{tpu_custom_call.1} parent=47 // pred_check_branch
          %1426 = sbr.rel (%p1424) target = $region52
        $region51: #{tpu_custom_call.1} parent=47 // pred_region
          %s1427 = sand.u32 %s118, 1
          %s1428 = scalar_lea.sflag [#allocation3], %s1427
          %s1429 = sand.u32 %s118, 1
          %s1430 = smul.addr %s1429, 12
          %s1431 = scalar_lea.vmem [#allocation2], %s1430
          %1432 = dma.done %s1428, 192
        $region52: #{tpu_custom_call.1} parent=47 // pred_fallthru
          _
        // Predicated region
        $region53: #{tpu_custom_call.1} parent=47 // pred_check
          %p1433 = pneg %p159
        $region54: #{tpu_custom_call.1} parent=47 // pred_check_branch
          %1435 = sbr.rel (%p1433) target = $region56
        $region55: #{tpu_custom_call.1} parent=47 // pred_region
          %p1436 = scmp.lt.s32.totalorder %s21, 1
          %s1437 = scalar_select %p1436, %s21, 1
          %s1438 = smul.addr %s1437, 8
          %s1439 = scalar_lea.vmem %s5, %s1438
        $region56: #{tpu_custom_call.1} parent=47 // pred_fallthru
          _
      $region48: #{tpu_custom_call.1} parent=5 // pred_fallthru
        _
    $region6: #{tpu_custom_call.1} parent=1 // loop_footer
      %s19 = sadd.s32 1, %s15
    $region7: #{tpu_custom_call.1} parent=1 // loop_footer_branch
      %14 = sbr.rel target = $region3
    $region8: #{tpu_custom_call.1} parent=1 // loop_exit
      _
    %1440 = vsyncpa [#allocation3], 1
    %s1441 = scalar_lea.sflag [#allocation3], 1
    %1442 = vsyncpa %s1441, 1

</llo_original>
